<compile_context>
chip_gen: v6e
topology: v6e:2x2x1
jax: 0.10.0
libtpu: 0.0.40
codegen_flags: <defaults>
</compile_context>

<pallas_src>
import functools

import jax
import jax.numpy as jnp
from jax import lax
from jax.experimental import pallas as pl
from jax.experimental.pallas import tpu as pltpu


# ----------------------------- Pallas kernel ---------------------------------
def gnn_kernel(a_ref, p_ref, x_ref,
               w1_ref, b1_ref, w2_ref, b2_ref, w3_ref, b3_ref,
               out_ref, *, num_classes):
    # a_ref : [N, N]        bf16  normalized adjacency (one block of graphs)
    # p_ref : [G, N]        bf16  mean-pool matrix
    # x_ref : [N, 1]        f32   node features (true F_in == 1)
    # w1_ref: [1, H1p]      f32   (rank-1 weight row)
    # w2_ref: [H1p, H2p]    bf16
    # w3_ref: [H2p, Cp]     bf16
    # b*_ref: [1, H*p]/[1,Cp] f32
    # out   : [G, Cp]       f32   log-probabilities (padded classes are junk, sliced off)

    # ---- GCNConv 1: rank-1 feature transform on the VPU, aggregation on the MXU ----
    xw = x_ref[...] * w1_ref[...]                                   # [N, H1p] f32 (VPU)
    h = jnp.dot(a_ref[...], xw.astype(jnp.bfloat16),
                preferred_element_type=jnp.float32) + b1_ref[...]
    h = jnp.maximum(h, 0.0)
    # dropout(p=0.5): identity in eval/inference mode (deterministic forward)

    # ---- GCNConv 2 ----
    h = jnp.dot(h.astype(jnp.bfloat16), w2_ref[...],
                preferred_element_type=jnp.float32)
    h = jnp.dot(a_ref[...], h.astype(jnp.bfloat16),
                preferred_element_type=jnp.float32) + b2_ref[...]
    h = jnp.maximum(h, 0.0)
    # dropout(p=0.5): identity in eval mode

    # ---- GCNConv 3 (no activation) ----
    h = jnp.dot(h.astype(jnp.bfloat16), w3_ref[...],
                preferred_element_type=jnp.float32)
    h = jnp.dot(a_ref[...], h.astype(jnp.bfloat16),
                preferred_element_type=jnp.float32) + b3_ref[...]   # [N, Cp]

    # ---- global_mean_pool: P @ h ----
    pooled = jnp.dot(p_ref[...], h.astype(jnp.bfloat16),
                     preferred_element_type=jnp.float32)            # [G, Cp]

    # ---- mask padded class columns, then stable log_softmax (128-lane dense) ----
    col = lax.broadcasted_iota(jnp.int32, pooled.shape, 1)
    pooled = jnp.where(col < num_classes, pooled, -1e30)
    m = jnp.max(pooled, axis=1, keepdims=True)
    z = pooled - m
    lse = jnp.log(jnp.sum(jnp.exp(z), axis=1, keepdims=True))
    out_ref[...] = z - lse


def enhanced_gnn_forward(a_hat, pool, x, padded_params, num_classes):
    """Full GNN forward; grid iterates over independent graph blocks ('parallel')."""
    w1, b1, w2, b2, w3, b3 = padded_params
    B, n_blk, _ = a_hat.shape
    g_blk = pool.shape[1]
    c_pad = w3.shape[1]

    # bf16 operands for the MXU; f32 is kept for x / w1 (VPU path) and all biases.
    a_bf = a_hat.astype(jnp.bfloat16)
    p_bf = pool.astype(jnp.bfloat16)
    w2_bf = w2.astype(jnp.bfloat16)
    w3_bf = w3.astype(jnp.bfloat16)

    def per_block(arr):          # [B, ...] -> one squeezed block per grid step
        return pl.BlockSpec((None,) + arr.shape[1:], lambda b: (b, 0, 0))

    def shared(arr):             # weights/biases: same full block every grid step
        return pl.BlockSpec(arr.shape, lambda b: (0,) * arr.ndim)

    kernel = functools.partial(gnn_kernel, num_classes=num_classes)

    return pl.pallas_call(
        kernel,
        out_shape=jax.ShapeDtypeStruct((B, g_blk, c_pad), jnp.float32),
        grid=(B,),
        in_specs=[
            per_block(a_bf),     # A_hat block [N, N]
            per_block(p_bf),     # pool block  [G, N]
            per_block(x),        # features    [N, 1]
            shared(w1), shared(b1),
            shared(w2_bf), shared(b2),
            shared(w3_bf), shared(b3),
        ],
        out_specs=pl.BlockSpec((None, g_blk, c_pad), lambda b: (b, 0, 0)),
        compiler_params=pltpu.CompilerParams(
            dimension_semantics=("parallel",)),    # blocks shard across v7x's 2 TCs
    )(a_bf, p_bf, x, w1, b1, w2_bf, b2, w3_bf, b3)


# ------------------------------ plain-JAX glue --------------------------------
def build_normalized_adjacency(edge_index, num_nodes):
    """Dense D^-1/2 (A + I) D^-1/2 (scatter-add, matching PyG GCNConv)."""
    src, dst = edge_index
    adj = jnp.zeros((num_nodes, num_nodes), jnp.float32)
    adj = adj.at[src, dst].add(1.0)
    adj = adj + jnp.eye(num_nodes, dtype=jnp.float32)          # self-loops
    deg = jnp.sum(adj, axis=1)
    dinv = jnp.where(deg > 0, 1.0 / jnp.sqrt(deg), 0.0)
    return dinv[:, None] * adj * dinv[None, :]


def build_mean_pool_matrix(batch, num_graphs):
    onehot = (batch[None, :] == jnp.arange(num_graphs)[:, None]).astype(jnp.float32)
    counts = jnp.maximum(jnp.sum(onehot, axis=1, keepdims=True), 1.0)
    return onehot / counts


def glorot(key, shape):
    fan_in, fan_out = shape
    limit = jnp.sqrt(6.0 / (fan_in + fan_out))
    return jax.random.uniform(key, shape, jnp.float32, -limit, limit)


if __name__ == "__main__":
    key = jax.random.PRNGKey(0)

    NUM_NODE_FEATURES = 1
    NUM_CLASSES = 8
    H1, H2 = 32, 64
    H1_PAD = H2_PAD = C_PAD = 128          # lane-dense padded widths

    B = 2                                  # independent node blocks per call (grid axis)
    GRAPHS_PER_BLOCK = 8                   # multiple of 8 -> sublane-aligned pooled rows
    NODES_PER_GRAPH = 16
    N_BLK = GRAPHS_PER_BLOCK * NODES_PER_GRAPH       # 128 nodes per block
    G_TOTAL = B * GRAPHS_PER_BLOCK                   # 16 graphs per call

    k_x, k1, k2, k3, kb1, kb2, kb3 = jax.random.split(key, 7)

    # --- per-block graph batch: bidirectional ring per graph (PyG-style edge_index) ----
    edges = []
    for g in range(GRAPHS_PER_BLOCK):
        base = g * NODES_PER_GRAPH
        for i in range(NODES_PER_GRAPH):
            a, b = base + i, base + (i + 1) % NODES_PER_GRAPH
            edges.append((a, b))
            edges.append((b, a))
    edge_index = jnp.array(edges, dtype=jnp.int32).T
    batch_local = jnp.repeat(jnp.arange(GRAPHS_PER_BLOCK, dtype=jnp.int32),
                             NODES_PER_GRAPH)

    a_hat_blk = build_normalized_adjacency(edge_index, N_BLK)      # [N_BLK, N_BLK]
    pool_blk = build_mean_pool_matrix(batch_local, GRAPHS_PER_BLOCK)  # [G_BLK, N_BLK]
    a_hat = jnp.stack([a_hat_blk] * B)                             # [B, N, N]
    pool = jnp.stack([pool_blk] * B)                               # [B, G, N]
    x = jax.random.normal(k_x, (B, N_BLK, NUM_NODE_FEATURES), jnp.float32)

    # --- true (unpadded) parameters --------------------------------------------------
    w1 = glorot(k1, (NUM_NODE_FEATURES, H1))
    w2 = glorot(k2, (H1, H2))
    w3 = glorot(k3, (H2, NUM_CLASSES))
    b1 = 0.1 * jax.random.normal(kb1, (1, H1), jnp.float32)
    b2 = 0.1 * jax.random.normal(kb2, (1, H2), jnp.float32)
    b3 = 0.1 * jax.random.normal(kb3, (1, NUM_CLASSES), jnp.float32)

    # --- zero-pad to lane-dense widths (exact math: padded slots are zero) -----------
    w1_p = jnp.zeros((NUM_NODE_FEATURES, H1_PAD), jnp.float32).at[:, :H1].set(w1)
    b1_p = jnp.zeros((1, H1_PAD), jnp.float32).at[:, :H1].set(b1)
    w2_p = jnp.zeros((H1_PAD, H2_PAD), jnp.float32).at[:H1, :H2].set(w2)
    b2_p = jnp.zeros((1, H2_PAD), jnp.float32).at[:, :H2].set(b2)
    w3_p = jnp.zeros((H2_PAD, C_PAD), jnp.float32).at[:H2, :NUM_CLASSES].set(w3)
    b3_p = jnp.zeros((1, C_PAD), jnp.float32).at[:, :NUM_CLASSES].set(b3)
    padded_params = (w1_p, b1_p, w2_p, b2_p, w3_p, b3_p)

    # --- run the Pallas kernel --------------------------------------------------------
    out_padded = enhanced_gnn_forward(a_hat, pool, x, padded_params, NUM_CLASSES)
    out_padded = jax.block_until_ready(out_padded)                 # [B, G_BLK, C_PAD]
    out = out_padded.reshape(G_TOTAL, C_PAD)[:, :NUM_CLASSES]      # [16, 8]

    # --- pure-JAX reference with identical bf16 operand casts --------------------------
    def ref_block(a_blk, p_blk, x_blk):
        a_b = a_blk.astype(jnp.bfloat16)
        p_b = p_blk.astype(jnp.bfloat16)
        h = x_blk * w1                                             # [N, H1] rank-1
        h = jnp.dot(a_b, h.astype(jnp.bfloat16),
                    preferred_element_type=jnp.float32) + b1
        h = jnp.maximum(h, 0.0)
        h = jnp.dot(h.astype(jnp.bfloat16), w2.astype(jnp.bfloat16),
                    preferred_element_type=jnp.float32)
        h = jnp.dot(a_b, h.astype(jnp.bfloat16),
                    preferred_element_type=jnp.float32) + b2
        h = jnp.maximum(h, 0.0)
        h = jnp.dot(h.astype(jnp.bfloat16), w3.astype(jnp.bfloat16),
                    preferred_element_type=jnp.float32)
        h = jnp.dot(a_b, h.astype(jnp.bfloat16),
                    preferred_element_type=jnp.float32) + b3
        pooled = jnp.dot(p_b, h.astype(jnp.bfloat16),
                         preferred_element_type=jnp.float32)
        return jax.nn.log_softmax(pooled, axis=1)

    ref = jnp.concatenate([ref_block(a_hat[i], pool[i], x[i]) for i in range(B)], axis=0)

    assert out.shape == (G_TOTAL, NUM_CLASSES)
    assert bool(jnp.all(jnp.isfinite(out)))
    assert jnp.allclose(out, ref, atol=2e-4, rtol=2e-4), (out, ref)

    print("KERNEL_OK")
</pallas_src>

<mosaic_0001>
module attributes {stable_mosaic.version = 11 : i64} {
  func.func @gnn_kernel(%arg0: i32, %arg1: memref<1x128x128xbf16, #tpu.memory_space<vmem>>, %arg2: memref<1x8x128xbf16, #tpu.memory_space<vmem>>, %arg3: memref<1x128x1xf32, #tpu.memory_space<vmem>>, %arg4: memref<1x128xf32, #tpu.memory_space<vmem>>, %arg5: memref<1x128xf32, #tpu.memory_space<vmem>>, %arg6: memref<128x128xbf16, #tpu.memory_space<vmem>>, %arg7: memref<1x128xf32, #tpu.memory_space<vmem>>, %arg8: memref<128x128xbf16, #tpu.memory_space<vmem>>, %arg9: memref<1x128xf32, #tpu.memory_space<vmem>>, %arg10: memref<1x8x128xf32, #tpu.memory_space<vmem>>) attributes {dimension_semantics = [#tpu.dimension_semantics<parallel>], iteration_bounds = array<i64: 2>, scalar_prefetch = 0 : i64, scratch_operands = 0 : i64, tpu.core_type = #tpu.core_type<tc>, window_params = [{transform_indices = @transform_0, window_bounds = array<i64: 1, 128, 128>}, {transform_indices = @transform_1, window_bounds = array<i64: 1, 8, 128>}, {transform_indices = @transform_2, window_bounds = array<i64: 1, 128, 1>}, {pipeline_mode = #tpu.pipeline_mode<synchronous>, transform_indices = @transform_3, window_bounds = array<i64: 1, 128>}, {pipeline_mode = #tpu.pipeline_mode<synchronous>, transform_indices = @transform_4, window_bounds = array<i64: 1, 128>}, {pipeline_mode = #tpu.pipeline_mode<synchronous>, transform_indices = @transform_5, window_bounds = array<i64: 128, 128>}, {pipeline_mode = #tpu.pipeline_mode<synchronous>, transform_indices = @transform_6, window_bounds = array<i64: 1, 128>}, {pipeline_mode = #tpu.pipeline_mode<synchronous>, transform_indices = @transform_7, window_bounds = array<i64: 128, 128>}, {pipeline_mode = #tpu.pipeline_mode<synchronous>, transform_indices = @transform_8, window_bounds = array<i64: 1, 128>}, {transform_indices = @transform_9, window_bounds = array<i64: 1, 8, 128>}]} {
    %c0 = arith.constant 0 : index
    %c0_0 = arith.constant 0 : index
    %c0_1 = arith.constant 0 : index
    %0 = vector.load %arg3[%c0, %c0_0, %c0_1] : memref<1x128x1xf32, #tpu.memory_space<vmem>>, vector<1x128x1xf32>
    %1 = vector.shape_cast %0 : vector<1x128x1xf32> to vector<128x1xf32>
    %c0_2 = arith.constant 0 : index
    %c0_3 = arith.constant 0 : index
    %2 = vector.load %arg4[%c0_2, %c0_3] : memref<1x128xf32, #tpu.memory_space<vmem>>, vector<1x128xf32>
    %3 = vector.broadcast %1 : vector<128x1xf32> to vector<128x128xf32>
    %4 = vector.broadcast %2 : vector<1x128xf32> to vector<128x128xf32>
    %5 = arith.mulf %3, %4 : vector<128x128xf32>
    %c0_4 = arith.constant 0 : index
    %c0_5 = arith.constant 0 : index
    %c0_6 = arith.constant 0 : index
    %6 = vector.load %arg1[%c0_4, %c0_5, %c0_6] : memref<1x128x128xbf16, #tpu.memory_space<vmem>>, vector<1x128x128xbf16>
    %7 = vector.shape_cast %6 : vector<1x128x128xbf16> to vector<128x128xbf16>
    %8 = arith.truncf %5 : vector<128x128xf32> to vector<128x128xbf16>
    %cst = arith.constant dense<0.000000e+00> : vector<128x128xf32>
    %9 = tpu.matmul %7, %8, %cst {dimension_numbers = #tpu.dot_dimension_numbers<[1], [0], [0], [1], [0, 0, 1, 1], [], []>} : vector<128x128xbf16>, vector<128x128xbf16>, vector<128x128xf32> -> vector<128x128xf32>
    %c0_7 = arith.constant 0 : index
    %c0_8 = arith.constant 0 : index
    %10 = vector.load %arg5[%c0_7, %c0_8] : memref<1x128xf32, #tpu.memory_space<vmem>>, vector<1x128xf32>
    %11 = vector.broadcast %10 : vector<1x128xf32> to vector<128x128xf32>
    %12 = arith.addf %9, %11 : vector<128x128xf32>
    %cst_9 = arith.constant 0.000000e+00 : f32
    %13 = vector.broadcast %cst_9 : f32 to vector<128x128xf32>
    %14 = arith.maximumf %12, %13 : vector<128x128xf32>
    %15 = arith.truncf %14 : vector<128x128xf32> to vector<128x128xbf16>
    %c0_10 = arith.constant 0 : index
    %c0_11 = arith.constant 0 : index
    %16 = vector.load %arg6[%c0_10, %c0_11] : memref<128x128xbf16, #tpu.memory_space<vmem>>, vector<128x128xbf16>
    %cst_12 = arith.constant dense<0.000000e+00> : vector<128x128xf32>
    %17 = tpu.matmul %15, %16, %cst_12 {dimension_numbers = #tpu.dot_dimension_numbers<[1], [0], [0], [1], [0, 0, 1, 1], [], []>} : vector<128x128xbf16>, vector<128x128xbf16>, vector<128x128xf32> -> vector<128x128xf32>
    %c0_13 = arith.constant 0 : index
    %c0_14 = arith.constant 0 : index
    %c0_15 = arith.constant 0 : index
    %18 = vector.load %arg1[%c0_13, %c0_14, %c0_15] : memref<1x128x128xbf16, #tpu.memory_space<vmem>>, vector<1x128x128xbf16>
    %19 = vector.shape_cast %18 : vector<1x128x128xbf16> to vector<128x128xbf16>
    %20 = arith.truncf %17 : vector<128x128xf32> to vector<128x128xbf16>
    %cst_16 = arith.constant dense<0.000000e+00> : vector<128x128xf32>
    %21 = tpu.matmul %19, %20, %cst_16 {dimension_numbers = #tpu.dot_dimension_numbers<[1], [0], [0], [1], [0, 0, 1, 1], [], []>} : vector<128x128xbf16>, vector<128x128xbf16>, vector<128x128xf32> -> vector<128x128xf32>
    %c0_17 = arith.constant 0 : index
    %c0_18 = arith.constant 0 : index
    %22 = vector.load %arg7[%c0_17, %c0_18] : memref<1x128xf32, #tpu.memory_space<vmem>>, vector<1x128xf32>
    %23 = vector.broadcast %22 : vector<1x128xf32> to vector<128x128xf32>
    %24 = arith.addf %21, %23 : vector<128x128xf32>
    %cst_19 = arith.constant 0.000000e+00 : f32
    %25 = vector.broadcast %cst_19 : f32 to vector<128x128xf32>
    %26 = arith.maximumf %24, %25 : vector<128x128xf32>
    %27 = arith.truncf %26 : vector<128x128xf32> to vector<128x128xbf16>
    %c0_20 = arith.constant 0 : index
    %c0_21 = arith.constant 0 : index
    %28 = vector.load %arg8[%c0_20, %c0_21] : memref<128x128xbf16, #tpu.memory_space<vmem>>, vector<128x128xbf16>
    %cst_22 = arith.constant dense<0.000000e+00> : vector<128x128xf32>
    %29 = tpu.matmul %27, %28, %cst_22 {dimension_numbers = #tpu.dot_dimension_numbers<[1], [0], [0], [1], [0, 0, 1, 1], [], []>} : vector<128x128xbf16>, vector<128x128xbf16>, vector<128x128xf32> -> vector<128x128xf32>
    %c0_23 = arith.constant 0 : index
    %c0_24 = arith.constant 0 : index
    %c0_25 = arith.constant 0 : index
    %30 = vector.load %arg1[%c0_23, %c0_24, %c0_25] : memref<1x128x128xbf16, #tpu.memory_space<vmem>>, vector<1x128x128xbf16>
    %31 = vector.shape_cast %30 : vector<1x128x128xbf16> to vector<128x128xbf16>
    %32 = arith.truncf %29 : vector<128x128xf32> to vector<128x128xbf16>
    %cst_26 = arith.constant dense<0.000000e+00> : vector<128x128xf32>
    %33 = tpu.matmul %31, %32, %cst_26 {dimension_numbers = #tpu.dot_dimension_numbers<[1], [0], [0], [1], [0, 0, 1, 1], [], []>} : vector<128x128xbf16>, vector<128x128xbf16>, vector<128x128xf32> -> vector<128x128xf32>
    %c0_27 = arith.constant 0 : index
    %c0_28 = arith.constant 0 : index
    %34 = vector.load %arg9[%c0_27, %c0_28] : memref<1x128xf32, #tpu.memory_space<vmem>>, vector<1x128xf32>
    %35 = vector.broadcast %34 : vector<1x128xf32> to vector<128x128xf32>
    %36 = arith.addf %33, %35 : vector<128x128xf32>
    %c0_29 = arith.constant 0 : index
    %c0_30 = arith.constant 0 : index
    %c0_31 = arith.constant 0 : index
    %37 = vector.load %arg2[%c0_29, %c0_30, %c0_31] : memref<1x8x128xbf16, #tpu.memory_space<vmem>>, vector<1x8x128xbf16>
    %38 = vector.shape_cast %37 : vector<1x8x128xbf16> to vector<8x128xbf16>
    %39 = arith.truncf %36 : vector<128x128xf32> to vector<128x128xbf16>
    %cst_32 = arith.constant dense<0.000000e+00> : vector<8x128xf32>
    %40 = tpu.matmul %38, %39, %cst_32 {dimension_numbers = #tpu.dot_dimension_numbers<[1], [0], [0], [1], [0, 0, 1, 1], [], []>} : vector<8x128xbf16>, vector<128x128xbf16>, vector<8x128xf32> -> vector<8x128xf32>
    %41 = tpu.iota {dimensions = array<i32: 1>} : vector<8x128xi32>
    %c8_i32 = arith.constant 8 : i32
    %42 = vector.broadcast %c8_i32 : i32 to vector<8x128xi32>
    %43 = arith.cmpi slt, %41, %42 : vector<8x128xi32>
    %cst_33 = arith.constant -1.000000e+30 : f32
    %44 = vector.broadcast %cst_33 : f32 to vector<8x128xf32>
    %45 = arith.select %43, %40, %44 : vector<8x128xi1>, vector<8x128xf32>
    %cst_34 = arith.constant dense<0xFF800000> : vector<8xf32>
    %46 = vector.multi_reduction <maximumf>, %45, %cst_34 [1] : vector<8x128xf32> to vector<8xf32>
    %47 = vector.shape_cast %46 : vector<8xf32> to vector<8x1xf32>
    %48 = vector.broadcast %47 : vector<8x1xf32> to vector<8x128xf32>
    %49 = arith.subf %45, %48 : vector<8x128xf32>
    %50 = math.exp %49 : vector<8x128xf32>
    %cst_35 = arith.constant dense<0.000000e+00> : vector<8xf32>
    %51 = vector.multi_reduction <add>, %50, %cst_35 [1] : vector<8x128xf32> to vector<8xf32>
    %52 = vector.shape_cast %51 : vector<8xf32> to vector<8x1xf32>
    %53 = math.log %52 : vector<8x1xf32>
    %54 = vector.broadcast %53 : vector<8x1xf32> to vector<8x128xf32>
    %55 = arith.subf %49, %54 : vector<8x128xf32>
    %c0_36 = arith.constant 0 : index
    %c0_37 = arith.constant 0 : index
    %c0_38 = arith.constant 0 : index
    %56 = vector.load %arg10[%c0_36, %c0_37, %c0_38] : memref<1x8x128xf32, #tpu.memory_space<vmem>>, vector<1x8x128xf32>
    %57 = vector.shape_cast %56 : vector<1x8x128xf32> to vector<8x128xf32>
    %58 = vector.shape_cast %55 : vector<8x128xf32> to vector<1x8x128xf32>
    tpu.vector_store %arg10[%c0_36, %c0_37, %c0_38], %58 {strides = array<i32>} : memref<1x8x128xf32, #tpu.memory_space<vmem>>, vector<1x8x128xf32>,
    return
  }
  func.func @transform_0(%arg0: i32) -> (i32, i32, i32) {
    %c0_i32 = arith.constant 0 : i32
    %c0_i32_0 = arith.constant 0 : i32
    %c0_i32_1 = arith.constant 0 : i32
    return %arg0, %c0_i32, %c0_i32_0 : i32, i32, i32
  }
  func.func @transform_1(%arg0: i32) -> (i32, i32, i32) {
    %c0_i32 = arith.constant 0 : i32
    %c0_i32_0 = arith.constant 0 : i32
    %c0_i32_1 = arith.constant 0 : i32
    return %arg0, %c0_i32, %c0_i32_0 : i32, i32, i32
  }
  func.func @transform_2(%arg0: i32) -> (i32, i32, i32) {
    %c0_i32 = arith.constant 0 : i32
    %c0_i32_0 = arith.constant 0 : i32
    %c0_i32_1 = arith.constant 0 : i32
    return %arg0, %c0_i32, %c0_i32_0 : i32, i32, i32
  }
  func.func @transform_3(%arg0: i32) -> (i32, i32) {
    %c0_i32 = arith.constant 0 : i32
    %c0_i32_0 = arith.constant 0 : i32
    %c0_i32_1 = arith.constant 0 : i32
    return %c0_i32, %c0_i32_0 : i32, i32
  }
  func.func @transform_4(%arg0: i32) -> (i32, i32) {
    %c0_i32 = arith.constant 0 : i32
    %c0_i32_0 = arith.constant 0 : i32
    %c0_i32_1 = arith.constant 0 : i32
    return %c0_i32, %c0_i32_0 : i32, i32
  }
  func.func @transform_5(%arg0: i32) -> (i32, i32) {
    %c0_i32 = arith.constant 0 : i32
    %c0_i32_0 = arith.constant 0 : i32
    %c0_i32_1 = arith.constant 0 : i32
    return %c0_i32, %c0_i32_0 : i32, i32
  }
  func.func @transform_6(%arg0: i32) -> (i32, i32) {
    %c0_i32 = arith.constant 0 : i32
    %c0_i32_0 = arith.constant 0 : i32
    %c0_i32_1 = arith.constant 0 : i32
    return %c0_i32, %c0_i32_0 : i32, i32
  }
  func.func @transform_7(%arg0: i32) -> (i32, i32) {
    %c0_i32 = arith.constant 0 : i32
    %c0_i32_0 = arith.constant 0 : i32
    %c0_i32_1 = arith.constant 0 : i32
    return %c0_i32, %c0_i32_0 : i32, i32
  }
  func.func @transform_8(%arg0: i32) -> (i32, i32) {
    %c0_i32 = arith.constant 0 : i32
    %c0_i32_0 = arith.constant 0 : i32
    %c0_i32_1 = arith.constant 0 : i32
    return %c0_i32, %c0_i32_0 : i32, i32
  }
  func.func @transform_9(%arg0: i32) -> (i32, i32, i32) {
    %c0_i32 = arith.constant 0 : i32
    %c0_i32_0 = arith.constant 0 : i32
    %c0_i32_1 = arith.constant 0 : i32
    return %arg0, %c0_i32, %c0_i32_0 : i32, i32, i32
  }
}

</mosaic_0001>

<llo_original>
// kernel: tpu_custom_call.1
$region0: #{tpu_custom_call.1}
  #allocation0 [shape = 'u32[]', space=smem, size = 0x4, offset = 0x4, fixed_abs, tag = 'smem constant byte address 0x4 - core index']
  #allocation1 [shape = 'u32[144,128]{1,0:T(1,128)}', space=vmem, size = 0x12000, scoped, tag = 'internal scratch']
  %s0 = inlined_call_operand.vmem [shape: bf16[2,128,128], index: 0, kind: input, shape index: {}]
  %s1 = inlined_call_operand.hbm [shape: bf16[2,8,128], index: 1, kind: input, shape index: {}]
  %s2 = inlined_call_operand.vmem [shape: f32[2,128,1], index: 2, kind: input, shape index: {}]
  %s3 = inlined_call_operand.vmem [shape: f32[1,128], index: 3, kind: input, shape index: {}]
  %s4 = inlined_call_operand.vmem [shape: f32[1,128], index: 4, kind: input, shape index: {}]
  %s5 = inlined_call_operand.vmem [shape: bf16[128,128], index: 5, kind: input, shape index: {}]
  %s6 = inlined_call_operand.vmem [shape: f32[1,128], index: 6, kind: input, shape index: {}]
  %s7 = inlined_call_operand.vmem [shape: bf16[128,128], index: 7, kind: input, shape index: {}]
  %s8 = inlined_call_operand.vmem [shape: f32[1,128], index: 8, kind: input, shape index: {}]
  %s9 = inlined_call_operand.hbm [shape: f32[2,8,128], index: 9, kind: output, shape index: {}]
  %s10 = sld [smem:[#allocation0]]
  $region73: #{tpu_custom_call.1} parent=0
    _
  %s12 = ssub.s32 1, %s10
  %s13 = scalar_select 0, %s12, %s10
  $region1: #{tpu_custom_call.1} parent=0
    #allocation2 [shape = 'u8[4096]{0}', space=vmem, size = 0x1000, scoped, tag = 'input window, operand 1']
    #allocation3 [shape = 's32[2]{0}', space=sflag, size = 0x8, scoped, tag = 'scoped memory for tpu_custom_call.1']
    #allocation4 [shape = 's32[2]{0}', space=sflag, size = 0x8, scoped, tag = 'scoped memory for tpu_custom_call.1']
    #allocation5 [shape = 'u8[8192]{0}', space=vmem, size = 0x2000, scoped, tag = 'output window, operand 0']
    %14 = vsyncpa [#allocation3], 0
    %s15 = scalar_lea.sflag [#allocation3], 1
    %16 = vsyncpa %s15, 0
    %17 = vsyncpa [#allocation4], 0
    %s18 = scalar_lea.sflag [#allocation4], 1
    %19 = vsyncpa %s18, 0
    loop: start=0, step=1, limit=4
    $region2: #{tpu_custom_call.1} parent=1 // loop_pre_header
      _
    $region3: #{tpu_custom_call.1} parent=1 // loop_header
      %s21 = sphi 0, %s25
      %p22 = scmp.ge.s32.totalorder %s21, 4
      %s31 = sphi 0, %s33
      %s34 = sphi 0, %s31
      %s35 = sphi 0, %s34
      %s51 = sphi 0, %s35
      %s57 = sphi 0, %s59
      %s60 = sphi 0, %s57
      %s61 = sphi 0, %s60
      %s77 = sphi 0, %s61
      %s83 = sphi 0, %s85
      %s86 = sphi 0, %s83
      %s87 = sphi 0, %s86
      %s103 = sphi 0, %s87
      %s107 = sphi 0, %s107
      %s109 = sphi 0, %s107
      %s110 = sphi 0, %s109
      %s124 = sphi 0, %s110
      %s128 = sphi 0, %s128
      %s130 = sphi 0, %s128
      %s131 = sphi 0, %s130
      %s145 = sphi 0, %s131
      %s149 = sphi 0, %s149
      %s151 = sphi 0, %s149
      %s152 = sphi 0, %s151
      %s166 = sphi 0, %s152
      %s170 = sphi 0, %s170
      %s172 = sphi 0, %s170
      %s173 = sphi 0, %s172
      %s187 = sphi 0, %s173
      %s191 = sphi 0, %s191
      %s193 = sphi 0, %s191
      %s194 = sphi 0, %s193
      %s208 = sphi 0, %s194
      %s212 = sphi 0, %s212
      %s214 = sphi 0, %s212
      %s215 = sphi 0, %s214
      %s229 = sphi 0, %s215
      %s235 = sphi 0, %s237
      %s238 = sphi 0, %s235
      %s239 = sphi 0, %s238
      %s255 = sphi 0, %s239
    $region4: #{tpu_custom_call.1} parent=1 // loop_header_branch
      %24 = sbr.rel (%p22) target = $region8
    $region5: #{tpu_custom_call.1} parent=1 // loop_body
      %s26 = ssub.s32 %s21, 1
      %s27 = ssub.s32 %s21, 2
      %s28 = sadd.s32 %s21, 1
      %s29 = ssub.s32 %s21, %s28
      %p30 = scmp.eq.s32.totalorder %s29, 0
      %s32 = sadd.s32 %s31, 1
      %s33 = scalar_select %p30, %s31, %s32
      %p36 = pneg %p30
      %p37 = scmp.eq.s32.totalorder %s21, 1
      %p38 = por %p36, %p37
      %p39 = scmp.ne.s32.totalorder %s31, %s34
      %p40 = scmp.eq.s32.totalorder %s21, 0
      %p41 = por %p39, %p40
      %p42 = scmp.ne.s32.totalorder %s31, %s34
      %p43 = scmp.eq.s32.totalorder %s26, 1
      %p44 = por %p42, %p43
      %p45 = scmp.ne.s32.totalorder %s34, %s35
      %p46 = scmp.eq.s32.totalorder %s26, 0
      %p47 = por %p45, %p46
      %p48 = scmp.ne.s32.totalorder %s34, %s35
      %p49 = scmp.eq.s32.totalorder %s27, 1
      %p50 = por %p48, %p49
      %p52 = scmp.ne.s32.totalorder %s35, %s51
      %p53 = scmp.eq.s32.totalorder %s27, 0
      %p54 = por %p52, %p53
      %s55 = ssub.s32 %s21, %s28
      %p56 = scmp.eq.s32.totalorder %s55, 0
      %s58 = sadd.s32 %s57, 1
      %s59 = scalar_select %p56, %s57, %s58
      %p62 = pneg %p56
      %p63 = scmp.eq.s32.totalorder %s21, 1
      %p64 = por %p62, %p63
      %p65 = scmp.ne.s32.totalorder %s57, %s60
      %p66 = scmp.eq.s32.totalorder %s21, 0
      %p67 = por %p65, %p66
      %p68 = scmp.ne.s32.totalorder %s57, %s60
      %p69 = scmp.eq.s32.totalorder %s26, 1
      %p70 = por %p68, %p69
      %p71 = scmp.ne.s32.totalorder %s60, %s61
      %p72 = scmp.eq.s32.totalorder %s26, 0
      %p73 = por %p71, %p72
      %p74 = scmp.ne.s32.totalorder %s60, %s61
      %p75 = scmp.eq.s32.totalorder %s27, 1
      %p76 = por %p74, %p75
      %p78 = scmp.ne.s32.totalorder %s61, %s77
      %p79 = scmp.eq.s32.totalorder %s27, 0
      %p80 = por %p78, %p79
      %s81 = ssub.s32 %s21, %s28
      %p82 = scmp.eq.s32.totalorder %s81, 0
      %s84 = sadd.s32 %s83, 1
      %s85 = scalar_select %p82, %s83, %s84
      %p88 = pneg %p82
      %p89 = scmp.eq.s32.totalorder %s21, 1
      %p90 = por %p88, %p89
      %p91 = scmp.ne.s32.totalorder %s83, %s86
      %p92 = scmp.eq.s32.totalorder %s21, 0
      %p93 = por %p91, %p92
      %p94 = scmp.ne.s32.totalorder %s83, %s86
      %p95 = scmp.eq.s32.totalorder %s26, 1
      %p96 = por %p94, %p95
      %p97 = scmp.ne.s32.totalorder %s86, %s87
      %p98 = scmp.eq.s32.totalorder %s26, 0
      %p99 = por %p97, %p98
      %p100 = scmp.ne.s32.totalorder %s86, %s87
      %p101 = scmp.eq.s32.totalorder %s27, 1
      %p102 = por %p100, %p101
      %p104 = scmp.ne.s32.totalorder %s87, %s103
      %p105 = scmp.eq.s32.totalorder %s27, 0
      %p106 = por %p104, %p105
      %s108 = sadd.s32 %s107, 1
      %p111 = scmp.eq.s32.totalorder %s21, 1
      %p112 = scmp.ne.s32.totalorder %s107, %s109
      %p113 = scmp.eq.s32.totalorder %s21, 0
      %p114 = por %p112, %p113
      %p115 = scmp.ne.s32.totalorder %s107, %s109
      %p116 = scmp.eq.s32.totalorder %s26, 1
      %p117 = por %p115, %p116
      %p118 = scmp.ne.s32.totalorder %s109, %s110
      %p119 = scmp.eq.s32.totalorder %s26, 0
      %p120 = por %p118, %p119
      %p121 = scmp.ne.s32.totalorder %s109, %s110
      %p122 = scmp.eq.s32.totalorder %s27, 1
      %p123 = por %p121, %p122
      %p125 = scmp.ne.s32.totalorder %s110, %s124
      %p126 = scmp.eq.s32.totalorder %s27, 0
      %p127 = por %p125, %p126
      %s129 = sadd.s32 %s128, 1
      %p132 = scmp.eq.s32.totalorder %s21, 1
      %p133 = scmp.ne.s32.totalorder %s128, %s130
      %p134 = scmp.eq.s32.totalorder %s21, 0
      %p135 = por %p133, %p134
      %p136 = scmp.ne.s32.totalorder %s128, %s130
      %p137 = scmp.eq.s32.totalorder %s26, 1
      %p138 = por %p136, %p137
      %p139 = scmp.ne.s32.totalorder %s130, %s131
      %p140 = scmp.eq.s32.totalorder %s26, 0
      %p141 = por %p139, %p140
      %p142 = scmp.ne.s32.totalorder %s130, %s131
      %p143 = scmp.eq.s32.totalorder %s27, 1
      %p144 = por %p142, %p143
      %p146 = scmp.ne.s32.totalorder %s131, %s145
      %p147 = scmp.eq.s32.totalorder %s27, 0
      %p148 = por %p146, %p147
      %s150 = sadd.s32 %s149, 1
      %p153 = scmp.eq.s32.totalorder %s21, 1
      %p154 = scmp.ne.s32.totalorder %s149, %s151
      %p155 = scmp.eq.s32.totalorder %s21, 0
      %p156 = por %p154, %p155
      %p157 = scmp.ne.s32.totalorder %s149, %s151
      %p158 = scmp.eq.s32.totalorder %s26, 1
      %p159 = por %p157, %p158
      %p160 = scmp.ne.s32.totalorder %s151, %s152
      %p161 = scmp.eq.s32.totalorder %s26, 0
      %p162 = por %p160, %p161
      %p163 = scmp.ne.s32.totalorder %s151, %s152
      %p164 = scmp.eq.s32.totalorder %s27, 1
      %p165 = por %p163, %p164
      %p167 = scmp.ne.s32.totalorder %s152, %s166
      %p168 = scmp.eq.s32.totalorder %s27, 0
      %p169 = por %p167, %p168
      %s171 = sadd.s32 %s170, 1
      %p174 = scmp.eq.s32.totalorder %s21, 1
      %p175 = scmp.ne.s32.totalorder %s170, %s172
      %p176 = scmp.eq.s32.totalorder %s21, 0
      %p177 = por %p175, %p176
      %p178 = scmp.ne.s32.totalorder %s170, %s172
      %p179 = scmp.eq.s32.totalorder %s26, 1
      %p180 = por %p178, %p179
      %p181 = scmp.ne.s32.totalorder %s172, %s173
      %p182 = scmp.eq.s32.totalorder %s26, 0
      %p183 = por %p181, %p182
      %p184 = scmp.ne.s32.totalorder %s172, %s173
      %p185 = scmp.eq.s32.totalorder %s27, 1
      %p186 = por %p184, %p185
      %p188 = scmp.ne.s32.totalorder %s173, %s187
      %p189 = scmp.eq.s32.totalorder %s27, 0
      %p190 = por %p188, %p189
      %s192 = sadd.s32 %s191, 1
      %p195 = scmp.eq.s32.totalorder %s21, 1
      %p196 = scmp.ne.s32.totalorder %s191, %s193
      %p197 = scmp.eq.s32.totalorder %s21, 0
      %p198 = por %p196, %p197
      %p199 = scmp.ne.s32.totalorder %s191, %s193
      %p200 = scmp.eq.s32.totalorder %s26, 1
      %p201 = por %p199, %p200
      %p202 = scmp.ne.s32.totalorder %s193, %s194
      %p203 = scmp.eq.s32.totalorder %s26, 0
      %p204 = por %p202, %p203
      %p205 = scmp.ne.s32.totalorder %s193, %s194
      %p206 = scmp.eq.s32.totalorder %s27, 1
      %p207 = por %p205, %p206
      %p209 = scmp.ne.s32.totalorder %s194, %s208
      %p210 = scmp.eq.s32.totalorder %s27, 0
      %p211 = por %p209, %p210
      %s213 = sadd.s32 %s212, 1
      %p216 = scmp.eq.s32.totalorder %s21, 1
      %p217 = scmp.ne.s32.totalorder %s212, %s214
      %p218 = scmp.eq.s32.totalorder %s21, 0
      %p219 = por %p217, %p218
      %p220 = scmp.ne.s32.totalorder %s212, %s214
      %p221 = scmp.eq.s32.totalorder %s26, 1
      %p222 = por %p220, %p221
      %p223 = scmp.ne.s32.totalorder %s214, %s215
      %p224 = scmp.eq.s32.totalorder %s26, 0
      %p225 = por %p223, %p224
      %p226 = scmp.ne.s32.totalorder %s214, %s215
      %p227 = scmp.eq.s32.totalorder %s27, 1
      %p228 = por %p226, %p227
      %p230 = scmp.ne.s32.totalorder %s215, %s229
      %p231 = scmp.eq.s32.totalorder %s27, 0
      %p232 = por %p230, %p231
      %s233 = ssub.s32 %s21, %s28
      %p234 = scmp.eq.s32.totalorder %s233, 0
      %s236 = sadd.s32 %s235, 1
      %s237 = scalar_select %p234, %s235, %s236
      %p240 = pneg %p234
      %p241 = scmp.eq.s32.totalorder %s21, 1
      %p242 = por %p240, %p241
      %p243 = scmp.ne.s32.totalorder %s235, %s238
      %p244 = scmp.eq.s32.totalorder %s21, 0
      %p245 = por %p243, %p244
      %p246 = scmp.ne.s32.totalorder %s235, %s238
      %p247 = scmp.eq.s32.totalorder %s26, 1
      %p248 = por %p246, %p247
      %p249 = scmp.ne.s32.totalorder %s238, %s239
      %p250 = scmp.eq.s32.totalorder %s26, 0
      %p251 = por %p249, %p250
      %p252 = scmp.ne.s32.totalorder %s238, %s239
      %p253 = scmp.eq.s32.totalorder %s27, 1
      %p254 = por %p252, %p253
      %p256 = scmp.ne.s32.totalorder %s239, %s255
      %p257 = scmp.eq.s32.totalorder %s27, 0
      %p258 = por %p256, %p257
      %p259 = scmp.le.s32.totalorder 1, %s21
      %p260 = scmp.lt.s32.totalorder %s21, 3
      %p261 = pnand %p259, %p260
      %p262 = pneg %p261
      // Predicated region
      $region9: #{tpu_custom_call.1} parent=5 // pred_check
        _
      $region10: #{tpu_custom_call.1} parent=5 // pred_check_branch
        %264 = sbr.rel (%p261) target = $region12
      $region11: #{tpu_custom_call.1} parent=5 // pred_region
        %s265 = ssub.s32 %s21, 1
        // Predicated region
        $region13: #{tpu_custom_call.1} parent=11 // pred_check
          %p266 = pneg %p120
        $region14: #{tpu_custom_call.1} parent=11 // pred_check_branch
          %268 = sbr.rel (%p266) target = $region16
        $region15: #{tpu_custom_call.1} parent=11 // pred_region
          _
        $region16: #{tpu_custom_call.1} parent=11 // pred_fallthru
          _
        // Predicated region
        $region17: #{tpu_custom_call.1} parent=11 // pred_check
          %p269 = pneg %p141
        $region18: #{tpu_custom_call.1} parent=11 // pred_check_branch
          %271 = sbr.rel (%p269) target = $region20
        $region19: #{tpu_custom_call.1} parent=11 // pred_region
          _
        $region20: #{tpu_custom_call.1} parent=11 // pred_fallthru
          _
        // Predicated region
        $region21: #{tpu_custom_call.1} parent=11 // pred_check
          %p272 = pneg %p162
        $region22: #{tpu_custom_call.1} parent=11 // pred_check_branch
          %274 = sbr.rel (%p272) target = $region24
        $region23: #{tpu_custom_call.1} parent=11 // pred_region
          _
        $region24: #{tpu_custom_call.1} parent=11 // pred_fallthru
          _
        // Predicated region
        $region25: #{tpu_custom_call.1} parent=11 // pred_check
          %p275 = pneg %p183
        $region26: #{tpu_custom_call.1} parent=11 // pred_check_branch
          %277 = sbr.rel (%p275) target = $region28
        $region27: #{tpu_custom_call.1} parent=11 // pred_region
          _
        $region28: #{tpu_custom_call.1} parent=11 // pred_fallthru
          _
        // Predicated region
        $region29: #{tpu_custom_call.1} parent=11 // pred_check
          %p278 = pneg %p204
        $region30: #{tpu_custom_call.1} parent=11 // pred_check_branch
          %280 = sbr.rel (%p278) target = $region32
        $region31: #{tpu_custom_call.1} parent=11 // pred_region
          _
        $region32: #{tpu_custom_call.1} parent=11 // pred_fallthru
          _
        // Predicated region
        $region33: #{tpu_custom_call.1} parent=11 // pred_check
          %p281 = pneg %p225
        $region34: #{tpu_custom_call.1} parent=11 // pred_check_branch
          %283 = sbr.rel (%p281) target = $region36
        $region35: #{tpu_custom_call.1} parent=11 // pred_region
          _
        $region36: #{tpu_custom_call.1} parent=11 // pred_fallthru
          _
      $region12: #{tpu_custom_call.1} parent=5 // pred_fallthru
        _
      %p284 = scmp.lt.s32.totalorder %s21, 2
      // Predicated region
      $region37: #{tpu_custom_call.1} parent=5 // pred_check
        %p285 = pneg %p284
      $region38: #{tpu_custom_call.1} parent=5 // pred_check_branch
        %287 = sbr.rel (%p285) target = $region40
      $region39: #{tpu_custom_call.1} parent=5 // pred_region
        // Predicated region
        $region41: #{tpu_custom_call.1} parent=39 // pred_check
          %p288 = pneg %p41
        $region42: #{tpu_custom_call.1} parent=39 // pred_check_branch
          %290 = sbr.rel (%p288) target = $region44
        $region43: #{tpu_custom_call.1} parent=39 // pred_region
          %p291 = scmp.lt.s32.totalorder %s21, 1
          %s292 = scalar_select %p291, %s21, 1
          %s293 = smul.addr %s292, 16
          %s294 = smul.addr %s293, 4
          %s295 = scalar_lea.vmem %s0, %s294
        $region44: #{tpu_custom_call.1} parent=39 // pred_fallthru
          _
        // Predicated region
        $region45: #{tpu_custom_call.1} parent=39 // pred_check
          %p296 = pneg %p67
        $region46: #{tpu_custom_call.1} parent=39 // pred_check_branch
          %298 = sbr.rel (%p296) target = $region48
        $region47: #{tpu_custom_call.1} parent=39 // pred_region
          %s299 = sand.u32 %s57, 1
          %s300 = scalar_lea.sflag [#allocation3], %s299
          %s301 = sand.u32 %s57, 1
          %s302 = smul.addr %s301, 4
          %s303 = scalar_lea.vmem [#allocation2], %s302
          %s305 = ssub.s32 64, 64
          %306 = vsyncadd %s300, %s305
          %s307 = smul.addr %s21, 64
          %s308 = scalar_lea.hbm %s1, %s307
          %s310 = sshll.u32 %s303, 4
          %s311 = int_to_ptr.vmem [resolvable:$true] %s310
          %313 = dma.hbm_to_vmem [thread:$0]  %s308, 64, %s311, %s300
        $region48: #{tpu_custom_call.1} parent=39 // pred_fallthru
          _
        // Predicated region
        $region49: #{tpu_custom_call.1} parent=39 // pred_check
          %p314 = pneg %p93
        $region50: #{tpu_custom_call.1} parent=39 // pred_check_branch
          %316 = sbr.rel (%p314) target = $region52
        $region51: #{tpu_custom_call.1} parent=39 // pred_region
          %p317 = scmp.lt.s32.totalorder %s21, 1
          %s318 = scalar_select %p317, %s21, 1
          %s319 = smul.addr %s318, 16
          %s320 = smul.addr %s319, 8
          %s321 = scalar_lea.vmem %s2, %s320
        $region52: #{tpu_custom_call.1} parent=39 // pred_fallthru
          _
      $region40: #{tpu_custom_call.1} parent=5 // pred_fallthru
        _
      %p322 = scmp.le.s32.totalorder 1, %s21
      %p323 = scmp.lt.s32.totalorder %s21, 3
      %p324 = pnand %p322, %p323
      %p325 = pneg %p324
      // Predicated region
      $region53: #{tpu_custom_call.1} parent=5 // pred_check
        _
      $region54: #{tpu_custom_call.1} parent=5 // pred_check_branch
        %327 = sbr.rel (%p324) target = $region56
      $region55: #{tpu_custom_call.1} parent=5 // pred_region
        %s328 = ssub.s32 %s21, 1
        %s329 = sand.u32 %s60, 1
        %s330 = scalar_lea.sflag [#allocation3], %s329
        %s331 = sand.u32 %s60, 1
        %s332 = smul.addr %s331, 4
        %s333 = scalar_lea.vmem [#allocation2], %s332
        // Predicated region
        $region57: #{tpu_custom_call.1} parent=55 // pred_check
          %p334 = pneg %p73
        $region58: #{tpu_custom_call.1} parent=55 // pred_check_branch
          %336 = sbr.rel (%p334) target = $region60
        $region59: #{tpu_custom_call.1} parent=55 // pred_region
          %337 = dma.done %s330, 64
        $region60: #{tpu_custom_call.1} parent=55 // pred_fallthru
          _
        %p338 = scmp.lt.s32.totalorder %s26, 1
        %s339 = scalar_select %p338, %s26, 1
        %s340 = smul.addr %s339, 16
        %s341 = smul.addr %s340, 4
        %s342 = scalar_lea.vmem %s0, %s341
        %p343 = pneg %p47
        %p344 = pneg %p44
        %s345 = sand.u32 %s60, 1
        %s346 = scalar_lea.sflag [#allocation3], %s345
        %s347 = sand.u32 %s60, 1
        %s348 = smul.addr %s347, 4
        %s349 = scalar_lea.vmem [#allocation2], %s348
        %p350 = pneg %p73
        %p351 = pneg %p70
        %p352 = scmp.lt.s32.totalorder %s26, 1
        %s353 = scalar_select %p352, %s26, 1
        %s354 = smul.addr %s353, 16
        %s355 = smul.addr %s354, 8
        %s356 = scalar_lea.vmem %s2, %s355
        %p357 = pneg %p99
        %p358 = pneg %p96
        %p359 = pneg %p120
        %p360 = pneg %p117
        %p361 = pneg %p141
        %p362 = pneg %p138
        %p363 = pneg %p162
        %p364 = pneg %p159
        %p365 = pneg %p183
        %p366 = pneg %p180
        %p367 = pneg %p204
        %p368 = pneg %p201
        %p369 = pneg %p225
        %p370 = pneg %p222
        %p371 = pneg %p251
        %p372 = pneg %p248
        %s373 = sand.u32 %s238, 1
        %s374 = scalar_lea.sflag [#allocation4], %s373
        %s375 = sand.u32 %s238, 1
        %s376 = smul.addr %s375, 8
        %s377 = scalar_lea.vmem [#allocation5], %s376
        %p378 = scmp.lt.s32.totalorder %s26, 1
        %s379 = scalar_select %p378, %s26, 1
        %s380 = smul.addr %s379, 16
        %s381 = smul.addr %s380, 4
        %s382 = scalar_lea.vmem %s0, %s381
        %p383 = scmp.lt.s32.totalorder %s26, 1
        %s384 = scalar_select %p383, %s26, 1
        %s385 = smul.addr %s384, 16
        %s386 = smul.addr %s385, 8
        %s387 = scalar_lea.vmem %s2, %s386
        %v389 = vld [vmem:[%s387] sm:$0xff]
        %v390 = vld [vmem:[%s387 + $0x8] sm:$0xff]
        %v391 = vld [vmem:[%s387 + $0x10] sm:$0xff]
        %v392 = vld [vmem:[%s387 + $0x18] sm:$0xff]
        %v393 = vld [vmem:[%s387 + $0x20] sm:$0xff]
        %v394 = vld [vmem:[%s387 + $0x28] sm:$0xff]
        %v395 = vld [vmem:[%s387 + $0x30] sm:$0xff]
        %v396 = vld [vmem:[%s387 + $0x38] sm:$0xff]
        %v397 = vld [vmem:[%s387 + $0x40] sm:$0xff]
        %v398 = vld [vmem:[%s387 + $0x48] sm:$0xff]
        %v399 = vld [vmem:[%s387 + $0x50] sm:$0xff]
        %v400 = vld [vmem:[%s387 + $0x58] sm:$0xff]
        %v401 = vld [vmem:[%s387 + $0x60] sm:$0xff]
        %v402 = vld [vmem:[%s387 + $0x68] sm:$0xff]
        %v403 = vld [vmem:[%s387 + $0x70] sm:$0xff]
        %v404 = vld [vmem:[%s387 + $0x78] sm:$0xff]
        %v405 = vld [vmem:[%s3] sm:$0x1]
        %407 = vset.pattern.permute.xlu0 0
        %408 = vperm.xlu0 %407, %v389
        %v409 = vpop.permute.xlu0 %408
        %412 = vset.pattern.permute.xlu0 0
        %413 = vperm.xlu0 %412, %v390
        %v414 = vpop.permute.xlu0 %413
        %417 = vset.pattern.permute.xlu0 0
        %418 = vperm.xlu0 %417, %v391
        %v419 = vpop.permute.xlu0 %418
        %422 = vset.pattern.permute.xlu0 0
        %423 = vperm.xlu0 %422, %v392
        %v424 = vpop.permute.xlu0 %423
        %427 = vset.pattern.permute.xlu0 0
        %428 = vperm.xlu0 %427, %v393
        %v429 = vpop.permute.xlu0 %428
        %432 = vset.pattern.permute.xlu0 0
        %433 = vperm.xlu0 %432, %v394
        %v434 = vpop.permute.xlu0 %433
        %437 = vset.pattern.permute.xlu0 0
        %438 = vperm.xlu0 %437, %v395
        %v439 = vpop.permute.xlu0 %438
        %442 = vset.pattern.permute.xlu0 0
        %443 = vperm.xlu0 %442, %v396
        %v444 = vpop.permute.xlu0 %443
        %447 = vset.pattern.permute.xlu0 0
        %448 = vperm.xlu0 %447, %v397
        %v449 = vpop.permute.xlu0 %448
        %452 = vset.pattern.permute.xlu0 0
        %453 = vperm.xlu0 %452, %v398
        %v454 = vpop.permute.xlu0 %453
        %457 = vset.pattern.permute.xlu0 0
        %458 = vperm.xlu0 %457, %v399
        %v459 = vpop.permute.xlu0 %458
        %462 = vset.pattern.permute.xlu0 0
        %463 = vperm.xlu0 %462, %v400
        %v464 = vpop.permute.xlu0 %463
        %467 = vset.pattern.permute.xlu0 0
        %468 = vperm.xlu0 %467, %v401
        %v469 = vpop.permute.xlu0 %468
        %472 = vset.pattern.permute.xlu0 0
        %473 = vperm.xlu0 %472, %v402
        %v474 = vpop.permute.xlu0 %473
        %477 = vset.pattern.permute.xlu0 0
        %478 = vperm.xlu0 %477, %v403
        %v479 = vpop.permute.xlu0 %478
        %482 = vset.pattern.permute.xlu0 0
        %483 = vperm.xlu0 %482, %v404
        %v484 = vpop.permute.xlu0 %483
        %v487 = vlaneseq
        %v488 = vshrl.u32 %v487, 7
        %v489 = vsub.s32 0, %v488
        %v490 = vrot.slane %v405, %v489
        %v492 = vmul.f32 %v409, %v490
        %v493 = vmul.f32 %v414, %v490
        %v494 = vmul.f32 %v419, %v490
        %v495 = vmul.f32 %v424, %v490
        %v496 = vmul.f32 %v429, %v490
        %v497 = vmul.f32 %v434, %v490
        %v498 = vmul.f32 %v439, %v490
        %v499 = vmul.f32 %v444, %v490
        %v500 = vmul.f32 %v449, %v490
        %v501 = vmul.f32 %v454, %v490
        %v502 = vmul.f32 %v459, %v490
        %v503 = vmul.f32 %v464, %v490
        %v504 = vmul.f32 %v469, %v490
        %v505 = vmul.f32 %v474, %v490
        %v506 = vmul.f32 %v479, %v490
        %v507 = vmul.f32 %v484, %v490
        %v508 = vld [vmem:[%s382] sm:$0xf]
        %v509 = vld [vmem:[%s382 + $0x4] sm:$0xf]
        %v510 = vld [vmem:[%s382 + $0x8] sm:$0xf]
        %v511 = vld [vmem:[%s382 + $0xc] sm:$0xf]
        %v512 = vld [vmem:[%s382 + $0x10] sm:$0xf]
        %v513 = vld [vmem:[%s382 + $0x14] sm:$0xf]
        %v514 = vld [vmem:[%s382 + $0x18] sm:$0xf]
        %v515 = vld [vmem:[%s382 + $0x1c] sm:$0xf]
        %v516 = vld [vmem:[%s382 + $0x20] sm:$0xf]
        %v517 = vld [vmem:[%s382 + $0x24] sm:$0xf]
        %v518 = vld [vmem:[%s382 + $0x28] sm:$0xf]
        %v519 = vld [vmem:[%s382 + $0x2c] sm:$0xf]
        %v520 = vld [vmem:[%s382 + $0x30] sm:$0xf]
        %v521 = vld [vmem:[%s382 + $0x34] sm:$0xf]
        %v522 = vld [vmem:[%s382 + $0x38] sm:$0xf]
        %v523 = vld [vmem:[%s382 + $0x3c] sm:$0xf]
        %v524 = vpack.c.bf16 %v493, %v492
        %v525 = vpack.c.bf16 %v495, %v494
        %v526 = vpack.c.bf16 %v497, %v496
        %v527 = vpack.c.bf16 %v499, %v498
        %v528 = vpack.c.bf16 %v501, %v500
        %v529 = vpack.c.bf16 %v503, %v502
        %v530 = vpack.c.bf16 %v505, %v504
        %v531 = vpack.c.bf16 %v507, %v506
        %v532 = vld [vmem:[%s4] sm:$0x1]
        %v534 = vlaneseq
        %v535 = vshrl.u32 %v534, 7
        %v536 = vsub.s32 0, %v535
        %v537 = vrot.slane %v532, %v536
        %v555 = vunpack.c.l.b16 %v508
        %v556 = vunpack.c.l.b16 %v509
        %v557 = vunpack.c.l.b16 %v510
        %v558 = vunpack.c.l.b16 %v511
        %v559 = vunpack.c.l.b16 %v512
        %v560 = vunpack.c.l.b16 %v513
        %v561 = vunpack.c.l.b16 %v514
        %v562 = vunpack.c.l.b16 %v515
        %v563 = vunpack.c.l.b16 %v516
        %v564 = vunpack.c.l.b16 %v517
        %v565 = vunpack.c.l.b16 %v518
        %v566 = vunpack.c.l.b16 %v519
        %v567 = vunpack.c.l.b16 %v520
        %v568 = vunpack.c.l.b16 %v521
        %v569 = vunpack.c.l.b16 %v522
        %v570 = vunpack.c.l.b16 %v523
        %v571 = vpack.c.b16 %v556, %v555
        %v572 = vpack.c.b16 %v558, %v557
        %v573 = vpack.c.b16 %v560, %v559
        %v574 = vpack.c.b16 %v562, %v561
        %v575 = vpack.c.b16 %v564, %v563
        %v576 = vpack.c.b16 %v566, %v565
        %v577 = vpack.c.b16 %v568, %v567
        %v578 = vpack.c.b16 %v570, %v569
        %587 = vmatprep.subr.bf16.mxu0 0
        %588 = vmatpush1.bf16.msra.mxu0 %v531
        %589 = vmatprep.subr.bf16.mxu0 0
        %590 = vmatpush1.bf16.msra.mxu0 %v530
        %591 = vmatprep.subr.bf16.mxu0 0
        %592 = vmatpush1.bf16.msra.mxu0 %v529
        %593 = vmatprep.subr.bf16.mxu0 0
        %594 = vmatpush1.bf16.msra.mxu0 %v528
        %595 = vmatprep.subr.bf16.mxu0 0
        %596 = vmatpush1.bf16.msra.mxu0 %v527
        %597 = vmatprep.subr.bf16.mxu0 0
        %598 = vmatpush1.bf16.msra.mxu0 %v526
        %599 = vmatprep.subr.bf16.mxu0 0
        %600 = vmatpush1.bf16.msra.mxu0 %v525
        %601 = vmatprep.subr.bf16.mxu0 0
        %602 = vmatpush1.bf16.msra.mxu0 %v524
        %603 = vmatprep.subr.bf16.mxu0 0
        %604 = vmatpush2.bf16.msra.mxu0 0
        %605 = vmatprep.subr.bf16.mxu0 0
        %606 = vmatpush2.bf16.msra.mxu0 0
        %607 = vmatprep.subr.bf16.mxu0 0
        %608 = vmatpush2.bf16.msra.mxu0 0
        %609 = vmatprep.subr.bf16.mxu0 0
        %610 = vmatpush2.bf16.msra.mxu0 0
        %611 = vmatprep.subr.bf16.mxu0 0
        %612 = vmatpush2.bf16.msra.mxu0 0
        %613 = vmatprep.subr.bf16.mxu0 0
        %614 = vmatpush2.bf16.msra.mxu0 0
        %615 = vmatprep.subr.bf16.mxu0 0
        %616 = vmatpush2.bf16.msra.mxu0 0
        %617 = vmatprep.subr.bf16.mxu0 0
        %618 = vmatpush2.bf16.msra.mxu0 0
        %619 = vmatprep.mubr.bf16.mxu0 0
        %620 = vmatmul.mubr.bf16.gmra.mxu0 %v571
        %v621 = vpop.f32.mrf.mxu0
        %v622 = vadd.f32 %v537, %v621
        %v623 = vpop.f32.mrf.mxu0
        %v624 = vpop.f32.mrf.mxu0
        %v625 = vadd.f32 %v537, %v624
        %v626 = vpop.f32.mrf.mxu0
        %627 = vmatprep.mubr.bf16.mxu0 0
        %628 = vmatmul.mubr.bf16.gmra.mxu0 %v572
        %v629 = vpop.f32.mrf.mxu0
        %v630 = vadd.f32 %v537, %v629
        %v631 = vpop.f32.mrf.mxu0
        %v632 = vpop.f32.mrf.mxu0
        %v633 = vadd.f32 %v537, %v632
        %v634 = vpop.f32.mrf.mxu0
        %635 = vmatprep.mubr.bf16.mxu0 0
        %636 = vmatmul.mubr.bf16.gmra.mxu0 %v573
        %v637 = vpop.f32.mrf.mxu0
        %v638 = vadd.f32 %v537, %v637
        %v639 = vpop.f32.mrf.mxu0
        %v640 = vpop.f32.mrf.mxu0
        %v641 = vadd.f32 %v537, %v640
        %v642 = vpop.f32.mrf.mxu0
        %643 = vmatprep.mubr.bf16.mxu0 0
        %644 = vmatmul.mubr.bf16.gmra.mxu0 %v574
        %v645 = vpop.f32.mrf.mxu0
        %v646 = vadd.f32 %v537, %v645
        %v647 = vpop.f32.mrf.mxu0
        %v648 = vpop.f32.mrf.mxu0
        %v649 = vadd.f32 %v537, %v648
        %v650 = vpop.f32.mrf.mxu0
        %651 = vmatprep.mubr.bf16.mxu0 0
        %652 = vmatmul.mubr.bf16.gmra.mxu0 %v575
        %v653 = vpop.f32.mrf.mxu0
        %v654 = vadd.f32 %v537, %v653
        %v655 = vpop.f32.mrf.mxu0
        %v656 = vpop.f32.mrf.mxu0
        %v657 = vadd.f32 %v537, %v656
        %v658 = vpop.f32.mrf.mxu0
        %659 = vmatprep.mubr.bf16.mxu0 0
        %660 = vmatmul.mubr.bf16.gmra.mxu0 %v576
        %v661 = vpop.f32.mrf.mxu0
        %v662 = vadd.f32 %v537, %v661
        %v663 = vpop.f32.mrf.mxu0
        %v664 = vpop.f32.mrf.mxu0
        %v665 = vadd.f32 %v537, %v664
        %v666 = vpop.f32.mrf.mxu0
        %667 = vmatprep.mubr.bf16.mxu0 0
        %668 = vmatmul.mubr.bf16.gmra.mxu0 %v577
        %v669 = vpop.f32.mrf.mxu0
        %v670 = vadd.f32 %v537, %v669
        %v671 = vpop.f32.mrf.mxu0
        %v672 = vpop.f32.mrf.mxu0
        %v673 = vadd.f32 %v537, %v672
        %v674 = vpop.f32.mrf.mxu0
        %675 = vmatprep.mubr.bf16.mxu0 0
        %676 = vmatmul.mubr.bf16.gmra.mxu0 %v578
        %v677 = vpop.f32.mrf.mxu0
        %v678 = vadd.f32 %v537, %v677
        %v679 = vpop.f32.mrf.mxu0
        %v680 = vpop.f32.mrf.mxu0
        %v681 = vadd.f32 %v537, %v680
        %v682 = vpop.f32.mrf.mxu0
        %683 = vdwg.mxu0
        %v684 = vmax.f32 %v622, 0.0
        %v685 = vmax.f32 %v625, 0.0
        %v686 = vmax.f32 %v630, 0.0
        %v687 = vmax.f32 %v633, 0.0
        %v688 = vmax.f32 %v638, 0.0
        %v689 = vmax.f32 %v641, 0.0
        %v690 = vmax.f32 %v646, 0.0
        %v691 = vmax.f32 %v649, 0.0
        %v692 = vmax.f32 %v654, 0.0
        %v693 = vmax.f32 %v657, 0.0
        %v694 = vmax.f32 %v662, 0.0
        %v695 = vmax.f32 %v665, 0.0
        %v696 = vmax.f32 %v670, 0.0
        %v697 = vmax.f32 %v673, 0.0
        %v698 = vmax.f32 %v678, 0.0
        %v699 = vmax.f32 %v681, 0.0
        %v700 = vpack.c.bf16 %v685, %v684
        %v701 = vpack.c.bf16 %v687, %v686
        %v702 = vpack.c.bf16 %v689, %v688
        %v703 = vpack.c.bf16 %v691, %v690
        %v704 = vpack.c.bf16 %v693, %v692
        %v705 = vpack.c.bf16 %v695, %v694
        %v706 = vpack.c.bf16 %v697, %v696
        %v707 = vpack.c.bf16 %v699, %v698
        %v708 = vld [vmem:[%s5] sm:$0xf]
        %v709 = vld [vmem:[%s5 + $0x4] sm:$0xf]
        %v710 = vld [vmem:[%s5 + $0x8] sm:$0xf]
        %v711 = vld [vmem:[%s5 + $0xc] sm:$0xf]
        %v712 = vld [vmem:[%s5 + $0x10] sm:$0xf]
        %v713 = vld [vmem:[%s5 + $0x14] sm:$0xf]
        %v714 = vld [vmem:[%s5 + $0x18] sm:$0xf]
        %v715 = vld [vmem:[%s5 + $0x1c] sm:$0xf]
        %v716 = vld [vmem:[%s5 + $0x20] sm:$0xf]
        %v717 = vld [vmem:[%s5 + $0x24] sm:$0xf]
        %v718 = vld [vmem:[%s5 + $0x28] sm:$0xf]
        %v719 = vld [vmem:[%s5 + $0x2c] sm:$0xf]
        %v720 = vld [vmem:[%s5 + $0x30] sm:$0xf]
        %v721 = vld [vmem:[%s5 + $0x34] sm:$0xf]
        %v722 = vld [vmem:[%s5 + $0x38] sm:$0xf]
        %v723 = vld [vmem:[%s5 + $0x3c] sm:$0xf]
        %v740 = vunpack.c.l.b16 %v708
        %v741 = vunpack.c.l.b16 %v709
        %v742 = vunpack.c.l.b16 %v710
        %v743 = vunpack.c.l.b16 %v711
        %v744 = vunpack.c.l.b16 %v712
        %v745 = vunpack.c.l.b16 %v713
        %v746 = vunpack.c.l.b16 %v714
        %v747 = vunpack.c.l.b16 %v715
        %v748 = vunpack.c.l.b16 %v716
        %v749 = vunpack.c.l.b16 %v717
        %v750 = vunpack.c.l.b16 %v718
        %v751 = vunpack.c.l.b16 %v719
        %v752 = vunpack.c.l.b16 %v720
        %v753 = vunpack.c.l.b16 %v721
        %v754 = vunpack.c.l.b16 %v722
        %v755 = vunpack.c.l.b16 %v723
        %v756 = vpack.c.b16 %v741, %v740
        %v757 = vpack.c.b16 %v743, %v742
        %v758 = vpack.c.b16 %v745, %v744
        %v759 = vpack.c.b16 %v747, %v746
        %v760 = vpack.c.b16 %v749, %v748
        %v761 = vpack.c.b16 %v751, %v750
        %v762 = vpack.c.b16 %v753, %v752
        %v763 = vpack.c.b16 %v755, %v754
        %772 = vmatprep.subr.bf16.mxu0 0
        %773 = vmatpush1.bf16.msra.mxu0 %v763
        %774 = vmatprep.subr.bf16.mxu0 0
        %775 = vmatpush1.bf16.msra.mxu0 %v762
        %776 = vmatprep.subr.bf16.mxu0 0
        %777 = vmatpush1.bf16.msra.mxu0 %v761
        %778 = vmatprep.subr.bf16.mxu0 0
        %779 = vmatpush1.bf16.msra.mxu0 %v760
        %780 = vmatprep.subr.bf16.mxu0 0
        %781 = vmatpush1.bf16.msra.mxu0 %v759
        %782 = vmatprep.subr.bf16.mxu0 0
        %783 = vmatpush1.bf16.msra.mxu0 %v758
        %784 = vmatprep.subr.bf16.mxu0 0
        %785 = vmatpush1.bf16.msra.mxu0 %v757
        %786 = vmatprep.subr.bf16.mxu0 0
        %787 = vmatpush1.bf16.msra.mxu0 %v756
        %788 = vmatprep.subr.bf16.mxu0 0
        %789 = vmatpush2.bf16.msra.mxu0 0
        %790 = vmatprep.subr.bf16.mxu0 0
        %791 = vmatpush2.bf16.msra.mxu0 0
        %792 = vmatprep.subr.bf16.mxu0 0
        %793 = vmatpush2.bf16.msra.mxu0 0
        %794 = vmatprep.subr.bf16.mxu0 0
        %795 = vmatpush2.bf16.msra.mxu0 0
        %796 = vmatprep.subr.bf16.mxu0 0
        %797 = vmatpush2.bf16.msra.mxu0 0
        %798 = vmatprep.subr.bf16.mxu0 0
        %799 = vmatpush2.bf16.msra.mxu0 0
        %800 = vmatprep.subr.bf16.mxu0 0
        %801 = vmatpush2.bf16.msra.mxu0 0
        %802 = vmatprep.subr.bf16.mxu0 0
        %803 = vmatpush2.bf16.msra.mxu0 0
        %804 = vmatprep.mubr.bf16.mxu0 0
        %805 = vmatmul.mubr.bf16.gmra.mxu0 %v700
        %v806 = vpop.f32.mrf.mxu0
        %v807 = vadd.f32 0.0, %v806
        %v808 = vpop.f32.mrf.mxu0
        %v809 = vpop.f32.mrf.mxu0
        %v810 = vadd.f32 0.0, %v809
        %v811 = vpop.f32.mrf.mxu0
        %812 = vmatprep.mubr.bf16.mxu0 0
        %813 = vmatmul.mubr.bf16.gmra.mxu0 %v701
        %v814 = vpop.f32.mrf.mxu0
        %v815 = vadd.f32 0.0, %v814
        %v816 = vpop.f32.mrf.mxu0
        %v817 = vpop.f32.mrf.mxu0
        %v818 = vadd.f32 0.0, %v817
        %v819 = vpop.f32.mrf.mxu0
        %820 = vmatprep.mubr.bf16.mxu0 0
        %821 = vmatmul.mubr.bf16.gmra.mxu0 %v702
        %v822 = vpop.f32.mrf.mxu0
        %v823 = vadd.f32 0.0, %v822
        %v824 = vpop.f32.mrf.mxu0
        %v825 = vpop.f32.mrf.mxu0
        %v826 = vadd.f32 0.0, %v825
        %v827 = vpop.f32.mrf.mxu0
        %828 = vmatprep.mubr.bf16.mxu0 0
        %829 = vmatmul.mubr.bf16.gmra.mxu0 %v703
        %v830 = vpop.f32.mrf.mxu0
        %v831 = vadd.f32 0.0, %v830
        %v832 = vpop.f32.mrf.mxu0
        %v833 = vpop.f32.mrf.mxu0
        %v834 = vadd.f32 0.0, %v833
        %v835 = vpop.f32.mrf.mxu0
        %836 = vmatprep.mubr.bf16.mxu0 0
        %837 = vmatmul.mubr.bf16.gmra.mxu0 %v704
        %v838 = vpop.f32.mrf.mxu0
        %v839 = vadd.f32 0.0, %v838
        %v840 = vpop.f32.mrf.mxu0
        %v841 = vpop.f32.mrf.mxu0
        %v842 = vadd.f32 0.0, %v841
        %v843 = vpop.f32.mrf.mxu0
        %844 = vmatprep.mubr.bf16.mxu0 0
        %845 = vmatmul.mubr.bf16.gmra.mxu0 %v705
        %v846 = vpop.f32.mrf.mxu0
        %v847 = vadd.f32 0.0, %v846
        %v848 = vpop.f32.mrf.mxu0
        %v849 = vpop.f32.mrf.mxu0
        %v850 = vadd.f32 0.0, %v849
        %v851 = vpop.f32.mrf.mxu0
        %852 = vmatprep.mubr.bf16.mxu0 0
        %853 = vmatmul.mubr.bf16.gmra.mxu0 %v706
        %v854 = vpop.f32.mrf.mxu0
        %v855 = vadd.f32 0.0, %v854
        %v856 = vpop.f32.mrf.mxu0
        %v857 = vpop.f32.mrf.mxu0
        %v858 = vadd.f32 0.0, %v857
        %v859 = vpop.f32.mrf.mxu0
        %860 = vmatprep.mubr.bf16.mxu0 0
        %861 = vmatmul.mubr.bf16.gmra.mxu0 %v707
        %v862 = vpop.f32.mrf.mxu0
        %v863 = vadd.f32 0.0, %v862
        %v864 = vpop.f32.mrf.mxu0
        %v865 = vpop.f32.mrf.mxu0
        %v866 = vadd.f32 0.0, %v865
        %v867 = vpop.f32.mrf.mxu0
        %868 = vdwg.mxu0
        %v869 = vpack.c.bf16 %v810, %v807
        %v870 = vpack.c.bf16 %v818, %v815
        %v871 = vpack.c.bf16 %v826, %v823
        %v872 = vpack.c.bf16 %v834, %v831
        %v873 = vpack.c.bf16 %v842, %v839
        %v874 = vpack.c.bf16 %v850, %v847
        %v875 = vpack.c.bf16 %v858, %v855
        %v876 = vpack.c.bf16 %v866, %v863
        %v877 = vld [vmem:[%s6] sm:$0x1]
        %v879 = vlaneseq
        %v880 = vshrl.u32 %v879, 7
        %v881 = vsub.s32 0, %v880
        %v882 = vrot.slane %v877, %v881
        %884 = vmatprep.subr.bf16.mxu0 0
        %885 = vmatpush1.bf16.msra.mxu0 %v876
        %886 = vmatprep.subr.bf16.mxu0 0
        %887 = vmatpush1.bf16.msra.mxu0 %v875
        %888 = vmatprep.subr.bf16.mxu0 0
        %889 = vmatpush1.bf16.msra.mxu0 %v874
        %890 = vmatprep.subr.bf16.mxu0 0
        %891 = vmatpush1.bf16.msra.mxu0 %v873
        %892 = vmatprep.subr.bf16.mxu0 0
        %893 = vmatpush1.bf16.msra.mxu0 %v872
        %894 = vmatprep.subr.bf16.mxu0 0
        %895 = vmatpush1.bf16.msra.mxu0 %v871
        %896 = vmatprep.subr.bf16.mxu0 0
        %897 = vmatpush1.bf16.msra.mxu0 %v870
        %898 = vmatprep.subr.bf16.mxu0 0
        %899 = vmatpush1.bf16.msra.mxu0 %v869
        %900 = vmatprep.subr.bf16.mxu0 0
        %901 = vmatpush2.bf16.msra.mxu0 0
        %902 = vmatprep.subr.bf16.mxu0 0
        %903 = vmatpush2.bf16.msra.mxu0 0
        %904 = vmatprep.subr.bf16.mxu0 0
        %905 = vmatpush2.bf16.msra.mxu0 0
        %906 = vmatprep.subr.bf16.mxu0 0
        %907 = vmatpush2.bf16.msra.mxu0 0
        %908 = vmatprep.subr.bf16.mxu0 0
        %909 = vmatpush2.bf16.msra.mxu0 0
        %910 = vmatprep.subr.bf16.mxu0 0
        %911 = vmatpush2.bf16.msra.mxu0 0
        %912 = vmatprep.subr.bf16.mxu0 0
        %913 = vmatpush2.bf16.msra.mxu0 0
        %914 = vmatprep.subr.bf16.mxu0 0
        %915 = vmatpush2.bf16.msra.mxu0 0
        %916 = vmatprep.mubr.bf16.mxu0 0
        %917 = vmatmul.mubr.bf16.gmra.mxu0 %v571
        %v918 = vpop.f32.mrf.mxu0
        %v919 = vadd.f32 %v882, %v918
        %v920 = vpop.f32.mrf.mxu0
        %v921 = vpop.f32.mrf.mxu0
        %v922 = vadd.f32 %v882, %v921
        %v923 = vpop.f32.mrf.mxu0
        %924 = vmatprep.mubr.bf16.mxu0 0
        %925 = vmatmul.mubr.bf16.gmra.mxu0 %v572
        %v926 = vpop.f32.mrf.mxu0
        %v927 = vadd.f32 %v882, %v926
        %v928 = vpop.f32.mrf.mxu0
        %v929 = vpop.f32.mrf.mxu0
        %v930 = vadd.f32 %v882, %v929
        %v931 = vpop.f32.mrf.mxu0
        %932 = vmatprep.mubr.bf16.mxu0 0
        %933 = vmatmul.mubr.bf16.gmra.mxu0 %v573
        %v934 = vpop.f32.mrf.mxu0
        %v935 = vadd.f32 %v882, %v934
        %v936 = vpop.f32.mrf.mxu0
        %v937 = vpop.f32.mrf.mxu0
        %v938 = vadd.f32 %v882, %v937
        %v939 = vpop.f32.mrf.mxu0
        %940 = vmatprep.mubr.bf16.mxu0 0
        %941 = vmatmul.mubr.bf16.gmra.mxu0 %v574
        %v942 = vpop.f32.mrf.mxu0
        %v943 = vadd.f32 %v882, %v942
        %v944 = vpop.f32.mrf.mxu0
        %v945 = vpop.f32.mrf.mxu0
        %v946 = vadd.f32 %v882, %v945
        %v947 = vpop.f32.mrf.mxu0
        %948 = vmatprep.mubr.bf16.mxu0 0
        %949 = vmatmul.mubr.bf16.gmra.mxu0 %v575
        %v950 = vpop.f32.mrf.mxu0
        %v951 = vadd.f32 %v882, %v950
        %v952 = vpop.f32.mrf.mxu0
        %v953 = vpop.f32.mrf.mxu0
        %v954 = vadd.f32 %v882, %v953
        %v955 = vpop.f32.mrf.mxu0
        %956 = vmatprep.mubr.bf16.mxu0 0
        %957 = vmatmul.mubr.bf16.gmra.mxu0 %v576
        %v958 = vpop.f32.mrf.mxu0
        %v959 = vadd.f32 %v882, %v958
        %v960 = vpop.f32.mrf.mxu0
        %v961 = vpop.f32.mrf.mxu0
        %v962 = vadd.f32 %v882, %v961
        %v963 = vpop.f32.mrf.mxu0
        %964 = vmatprep.mubr.bf16.mxu0 0
        %965 = vmatmul.mubr.bf16.gmra.mxu0 %v577
        %v966 = vpop.f32.mrf.mxu0
        %v967 = vadd.f32 %v882, %v966
        %v968 = vpop.f32.mrf.mxu0
        %v969 = vpop.f32.mrf.mxu0
        %v970 = vadd.f32 %v882, %v969
        %v971 = vpop.f32.mrf.mxu0
        %972 = vmatprep.mubr.bf16.mxu0 0
        %973 = vmatmul.mubr.bf16.gmra.mxu0 %v578
        %v974 = vpop.f32.mrf.mxu0
        %v975 = vadd.f32 %v882, %v974
        %v976 = vpop.f32.mrf.mxu0
        %v977 = vpop.f32.mrf.mxu0
        %v978 = vadd.f32 %v882, %v977
        %v979 = vpop.f32.mrf.mxu0
        %980 = vdwg.mxu0
        %v981 = vmax.f32 %v919, 0.0
        %v982 = vmax.f32 %v922, 0.0
        %v983 = vmax.f32 %v927, 0.0
        %v984 = vmax.f32 %v930, 0.0
        %v985 = vmax.f32 %v935, 0.0
        %v986 = vmax.f32 %v938, 0.0
        %v987 = vmax.f32 %v943, 0.0
        %v988 = vmax.f32 %v946, 0.0
        %v989 = vmax.f32 %v951, 0.0
        %v990 = vmax.f32 %v954, 0.0
        %v991 = vmax.f32 %v959, 0.0
        %v992 = vmax.f32 %v962, 0.0
        %v993 = vmax.f32 %v967, 0.0
        %v994 = vmax.f32 %v970, 0.0
        %v995 = vmax.f32 %v975, 0.0
        %v996 = vmax.f32 %v978, 0.0
        %v997 = vpack.c.bf16 %v982, %v981
        %v998 = vpack.c.bf16 %v984, %v983
        %v999 = vpack.c.bf16 %v986, %v985
        %v1000 = vpack.c.bf16 %v988, %v987
        %v1001 = vpack.c.bf16 %v990, %v989
        %v1002 = vpack.c.bf16 %v992, %v991
        %v1003 = vpack.c.bf16 %v994, %v993
        %v1004 = vpack.c.bf16 %v996, %v995
        %v1005 = vld [vmem:[%s7] sm:$0xf]
        %v1006 = vld [vmem:[%s7 + $0x4] sm:$0xf]
        %v1007 = vld [vmem:[%s7 + $0x8] sm:$0xf]
        %v1008 = vld [vmem:[%s7 + $0xc] sm:$0xf]
        %v1009 = vld [vmem:[%s7 + $0x10] sm:$0xf]
        %v1010 = vld [vmem:[%s7 + $0x14] sm:$0xf]
        %v1011 = vld [vmem:[%s7 + $0x18] sm:$0xf]
        %v1012 = vld [vmem:[%s7 + $0x1c] sm:$0xf]
        %v1013 = vld [vmem:[%s7 + $0x20] sm:$0xf]
        %v1014 = vld [vmem:[%s7 + $0x24] sm:$0xf]
        %v1015 = vld [vmem:[%s7 + $0x28] sm:$0xf]
        %v1016 = vld [vmem:[%s7 + $0x2c] sm:$0xf]
        %v1017 = vld [vmem:[%s7 + $0x30] sm:$0xf]
        %v1018 = vld [vmem:[%s7 + $0x34] sm:$0xf]
        %v1019 = vld [vmem:[%s7 + $0x38] sm:$0xf]
        %v1020 = vld [vmem:[%s7 + $0x3c] sm:$0xf]
        %v1037 = vunpack.c.l.b16 %v1005
        %v1038 = vunpack.c.l.b16 %v1006
        %v1039 = vunpack.c.l.b16 %v1007
        %v1040 = vunpack.c.l.b16 %v1008
        %v1041 = vunpack.c.l.b16 %v1009
        %v1042 = vunpack.c.l.b16 %v1010
        %v1043 = vunpack.c.l.b16 %v1011
        %v1044 = vunpack.c.l.b16 %v1012
        %v1045 = vunpack.c.l.b16 %v1013
        %v1046 = vunpack.c.l.b16 %v1014
        %v1047 = vunpack.c.l.b16 %v1015
        %v1048 = vunpack.c.l.b16 %v1016
        %v1049 = vunpack.c.l.b16 %v1017
        %v1050 = vunpack.c.l.b16 %v1018
        %v1051 = vunpack.c.l.b16 %v1019
        %v1052 = vunpack.c.l.b16 %v1020
        %v1053 = vpack.c.b16 %v1038, %v1037
        %v1054 = vpack.c.b16 %v1040, %v1039
        %v1055 = vpack.c.b16 %v1042, %v1041
        %v1056 = vpack.c.b16 %v1044, %v1043
        %v1057 = vpack.c.b16 %v1046, %v1045
        %v1058 = vpack.c.b16 %v1048, %v1047
        %v1059 = vpack.c.b16 %v1050, %v1049
        %v1060 = vpack.c.b16 %v1052, %v1051
        %1069 = vmatprep.subr.bf16.mxu0 0
        %1070 = vmatpush1.bf16.msra.mxu0 %v1060
        %1071 = vmatprep.subr.bf16.mxu0 0
        %1072 = vmatpush1.bf16.msra.mxu0 %v1059
        %1073 = vmatprep.subr.bf16.mxu0 0
        %1074 = vmatpush1.bf16.msra.mxu0 %v1058
        %1075 = vmatprep.subr.bf16.mxu0 0
        %1076 = vmatpush1.bf16.msra.mxu0 %v1057
        %1077 = vmatprep.subr.bf16.mxu0 0
        %1078 = vmatpush1.bf16.msra.mxu0 %v1056
        %1079 = vmatprep.subr.bf16.mxu0 0
        %1080 = vmatpush1.bf16.msra.mxu0 %v1055
        %1081 = vmatprep.subr.bf16.mxu0 0
        %1082 = vmatpush1.bf16.msra.mxu0 %v1054
        %1083 = vmatprep.subr.bf16.mxu0 0
        %1084 = vmatpush1.bf16.msra.mxu0 %v1053
        %1085 = vmatprep.subr.bf16.mxu0 0
        %1086 = vmatpush2.bf16.msra.mxu0 0
        %1087 = vmatprep.subr.bf16.mxu0 0
        %1088 = vmatpush2.bf16.msra.mxu0 0
        %1089 = vmatprep.subr.bf16.mxu0 0
        %1090 = vmatpush2.bf16.msra.mxu0 0
        %1091 = vmatprep.subr.bf16.mxu0 0
        %1092 = vmatpush2.bf16.msra.mxu0 0
        %1093 = vmatprep.subr.bf16.mxu0 0
        %1094 = vmatpush2.bf16.msra.mxu0 0
        %1095 = vmatprep.subr.bf16.mxu0 0
        %1096 = vmatpush2.bf16.msra.mxu0 0
        %1097 = vmatprep.subr.bf16.mxu0 0
        %1098 = vmatpush2.bf16.msra.mxu0 0
        %1099 = vmatprep.subr.bf16.mxu0 0
        %1100 = vmatpush2.bf16.msra.mxu0 0
        %1101 = vmatprep.mubr.bf16.mxu0 0
        %1102 = vmatmul.mubr.bf16.gmra.mxu0 %v997
        %v1103 = vpop.f32.mrf.mxu0
        %v1104 = vadd.f32 0.0, %v1103
        %v1105 = vpop.f32.mrf.mxu0
        %v1106 = vpop.f32.mrf.mxu0
        %v1107 = vadd.f32 0.0, %v1106
        %v1108 = vpop.f32.mrf.mxu0
        %1109 = vmatprep.mubr.bf16.mxu0 0
        %1110 = vmatmul.mubr.bf16.gmra.mxu0 %v998
        %v1111 = vpop.f32.mrf.mxu0
        %v1112 = vadd.f32 0.0, %v1111
        %v1113 = vpop.f32.mrf.mxu0
        %v1114 = vpop.f32.mrf.mxu0
        %v1115 = vadd.f32 0.0, %v1114
        %v1116 = vpop.f32.mrf.mxu0
        %1117 = vmatprep.mubr.bf16.mxu0 0
        %1118 = vmatmul.mubr.bf16.gmra.mxu0 %v999
        %v1119 = vpop.f32.mrf.mxu0
        %v1120 = vadd.f32 0.0, %v1119
        %v1121 = vpop.f32.mrf.mxu0
        %v1122 = vpop.f32.mrf.mxu0
        %v1123 = vadd.f32 0.0, %v1122
        %v1124 = vpop.f32.mrf.mxu0
        %1125 = vmatprep.mubr.bf16.mxu0 0
        %1126 = vmatmul.mubr.bf16.gmra.mxu0 %v1000
        %v1127 = vpop.f32.mrf.mxu0
        %v1128 = vadd.f32 0.0, %v1127
        %v1129 = vpop.f32.mrf.mxu0
        %v1130 = vpop.f32.mrf.mxu0
        %v1131 = vadd.f32 0.0, %v1130
        %v1132 = vpop.f32.mrf.mxu0
        %1133 = vmatprep.mubr.bf16.mxu0 0
        %1134 = vmatmul.mubr.bf16.gmra.mxu0 %v1001
        %v1135 = vpop.f32.mrf.mxu0
        %v1136 = vadd.f32 0.0, %v1135
        %v1137 = vpop.f32.mrf.mxu0
        %v1138 = vpop.f32.mrf.mxu0
        %v1139 = vadd.f32 0.0, %v1138
        %v1140 = vpop.f32.mrf.mxu0
        %1141 = vmatprep.mubr.bf16.mxu0 0
        %1142 = vmatmul.mubr.bf16.gmra.mxu0 %v1002
        %v1143 = vpop.f32.mrf.mxu0
        %v1144 = vadd.f32 0.0, %v1143
        %v1145 = vpop.f32.mrf.mxu0
        %v1146 = vpop.f32.mrf.mxu0
        %v1147 = vadd.f32 0.0, %v1146
        %v1148 = vpop.f32.mrf.mxu0
        %1149 = vmatprep.mubr.bf16.mxu0 0
        %1150 = vmatmul.mubr.bf16.gmra.mxu0 %v1003
        %v1151 = vpop.f32.mrf.mxu0
        %v1152 = vadd.f32 0.0, %v1151
        %v1153 = vpop.f32.mrf.mxu0
        %v1154 = vpop.f32.mrf.mxu0
        %v1155 = vadd.f32 0.0, %v1154
        %v1156 = vpop.f32.mrf.mxu0
        %1157 = vmatprep.mubr.bf16.mxu0 0
        %1158 = vmatmul.mubr.bf16.gmra.mxu0 %v1004
        %v1159 = vpop.f32.mrf.mxu0
        %v1160 = vadd.f32 0.0, %v1159
        %v1161 = vpop.f32.mrf.mxu0
        %v1162 = vpop.f32.mrf.mxu0
        %v1163 = vadd.f32 0.0, %v1162
        %v1164 = vpop.f32.mrf.mxu0
        %1165 = vdwg.mxu0
        %v1166 = vpack.c.bf16 %v1107, %v1104
        %v1167 = vpack.c.bf16 %v1115, %v1112
        %v1168 = vpack.c.bf16 %v1123, %v1120
        %v1169 = vpack.c.bf16 %v1131, %v1128
        %v1170 = vpack.c.bf16 %v1139, %v1136
        %v1171 = vpack.c.bf16 %v1147, %v1144
        %v1172 = vpack.c.bf16 %v1155, %v1152
        %v1173 = vpack.c.bf16 %v1163, %v1160
        %v1174 = vld [vmem:[%s8] sm:$0x1]
        %v1176 = vlaneseq
        %v1177 = vshrl.u32 %v1176, 7
        %v1178 = vsub.s32 0, %v1177
        %v1179 = vrot.slane %v1174, %v1178
        %1181 = vmatprep.subr.bf16.mxu0 0
        %1182 = vmatpush1.bf16.msra.mxu0 %v1173
        %1183 = vmatprep.subr.bf16.mxu0 0
        %1184 = vmatpush1.bf16.msra.mxu0 %v1172
        %1185 = vmatprep.subr.bf16.mxu0 0
        %1186 = vmatpush1.bf16.msra.mxu0 %v1171
        %1187 = vmatprep.subr.bf16.mxu0 0
        %1188 = vmatpush1.bf16.msra.mxu0 %v1170
        %1189 = vmatprep.subr.bf16.mxu0 0
        %1190 = vmatpush1.bf16.msra.mxu0 %v1169
        %1191 = vmatprep.subr.bf16.mxu0 0
        %1192 = vmatpush1.bf16.msra.mxu0 %v1168
        %1193 = vmatprep.subr.bf16.mxu0 0
        %1194 = vmatpush1.bf16.msra.mxu0 %v1167
        %1195 = vmatprep.subr.bf16.mxu0 0
        %1196 = vmatpush1.bf16.msra.mxu0 %v1166
        %1197 = vmatprep.subr.bf16.mxu0 0
        %1198 = vmatpush2.bf16.msra.mxu0 0
        %1199 = vmatprep.subr.bf16.mxu0 0
        %1200 = vmatpush2.bf16.msra.mxu0 0
        %1201 = vmatprep.subr.bf16.mxu0 0
        %1202 = vmatpush2.bf16.msra.mxu0 0
        %1203 = vmatprep.subr.bf16.mxu0 0
        %1204 = vmatpush2.bf16.msra.mxu0 0
        %1205 = vmatprep.subr.bf16.mxu0 0
        %1206 = vmatpush2.bf16.msra.mxu0 0
        %1207 = vmatprep.subr.bf16.mxu0 0
        %1208 = vmatpush2.bf16.msra.mxu0 0
        %1209 = vmatprep.subr.bf16.mxu0 0
        %1210 = vmatpush2.bf16.msra.mxu0 0
        %1211 = vmatprep.subr.bf16.mxu0 0
        %1212 = vmatpush2.bf16.msra.mxu0 0
        %1213 = vmatprep.mubr.bf16.mxu0 0
        %1214 = vmatmul.mubr.bf16.gmra.mxu0 %v571
        %v1215 = vpop.f32.mrf.mxu0
        %v1216 = vadd.f32 %v1179, %v1215
        %v1217 = vpop.f32.mrf.mxu0
        %v1218 = vpop.f32.mrf.mxu0
        %v1219 = vadd.f32 %v1179, %v1218
        %v1220 = vpop.f32.mrf.mxu0
        %1221 = vmatprep.mubr.bf16.mxu0 0
        %1222 = vmatmul.mubr.bf16.gmra.mxu0 %v572
        %v1223 = vpop.f32.mrf.mxu0
        %v1224 = vadd.f32 %v1179, %v1223
        %v1225 = vpop.f32.mrf.mxu0
        %v1226 = vpop.f32.mrf.mxu0
        %v1227 = vadd.f32 %v1179, %v1226
        %v1228 = vpop.f32.mrf.mxu0
        %1229 = vmatprep.mubr.bf16.mxu0 0
        %1230 = vmatmul.mubr.bf16.gmra.mxu0 %v573
        %v1231 = vpop.f32.mrf.mxu0
        %v1232 = vadd.f32 %v1179, %v1231
        %v1233 = vpop.f32.mrf.mxu0
        %v1234 = vpop.f32.mrf.mxu0
        %v1235 = vadd.f32 %v1179, %v1234
        %v1236 = vpop.f32.mrf.mxu0
        %1237 = vmatprep.mubr.bf16.mxu0 0
        %1238 = vmatmul.mubr.bf16.gmra.mxu0 %v574
        %v1239 = vpop.f32.mrf.mxu0
        %v1240 = vadd.f32 %v1179, %v1239
        %v1241 = vpop.f32.mrf.mxu0
        %v1242 = vpop.f32.mrf.mxu0
        %v1243 = vadd.f32 %v1179, %v1242
        %v1244 = vpop.f32.mrf.mxu0
        %1245 = vmatprep.mubr.bf16.mxu0 0
        %1246 = vmatmul.mubr.bf16.gmra.mxu0 %v575
        %v1247 = vpop.f32.mrf.mxu0
        %v1248 = vadd.f32 %v1179, %v1247
        %v1249 = vpop.f32.mrf.mxu0
        %v1250 = vpop.f32.mrf.mxu0
        %v1251 = vadd.f32 %v1179, %v1250
        %v1252 = vpop.f32.mrf.mxu0
        %1253 = vmatprep.mubr.bf16.mxu0 0
        %1254 = vmatmul.mubr.bf16.gmra.mxu0 %v576
        %v1255 = vpop.f32.mrf.mxu0
        %v1256 = vadd.f32 %v1179, %v1255
        %v1257 = vpop.f32.mrf.mxu0
        %v1258 = vpop.f32.mrf.mxu0
        %v1259 = vadd.f32 %v1179, %v1258
        %v1260 = vpop.f32.mrf.mxu0
        %1261 = vmatprep.mubr.bf16.mxu0 0
        %1262 = vmatmul.mubr.bf16.gmra.mxu0 %v577
        %v1263 = vpop.f32.mrf.mxu0
        %v1264 = vadd.f32 %v1179, %v1263
        %v1265 = vpop.f32.mrf.mxu0
        %v1266 = vpop.f32.mrf.mxu0
        %v1267 = vadd.f32 %v1179, %v1266
        %v1268 = vpop.f32.mrf.mxu0
        %1269 = vmatprep.mubr.bf16.mxu0 0
        %1270 = vmatmul.mubr.bf16.gmra.mxu0 %v578
        %v1271 = vpop.f32.mrf.mxu0
        %v1272 = vadd.f32 %v1179, %v1271
        %v1273 = vpop.f32.mrf.mxu0
        %v1274 = vpop.f32.mrf.mxu0
        %v1275 = vadd.f32 %v1179, %v1274
        %v1276 = vpop.f32.mrf.mxu0
        %1277 = vdwg.mxu0
        %v1278 = vld [vmem:[%s333] sm:$0xf]
        %v1279 = vpack.c.bf16 %v1219, %v1216
        %v1280 = vpack.c.bf16 %v1227, %v1224
        %v1281 = vpack.c.bf16 %v1235, %v1232
        %v1282 = vpack.c.bf16 %v1243, %v1240
        %v1283 = vpack.c.bf16 %v1251, %v1248
        %v1284 = vpack.c.bf16 %v1259, %v1256
        %v1285 = vpack.c.bf16 %v1267, %v1264
        %v1286 = vpack.c.bf16 %v1275, %v1272
        %1287 = vmatprep.subr.bf16.mxu0 0
        %1288 = vmatpush1.bf16.msra.mxu0 %v1286
        %1289 = vmatprep.subr.bf16.mxu0 0
        %1290 = vmatpush1.bf16.msra.mxu0 %v1285
        %1291 = vmatprep.subr.bf16.mxu0 0
        %1292 = vmatpush1.bf16.msra.mxu0 %v1284
        %1293 = vmatprep.subr.bf16.mxu0 0
        %1294 = vmatpush1.bf16.msra.mxu0 %v1283
        %1295 = vmatprep.subr.bf16.mxu0 0
        %1296 = vmatpush1.bf16.msra.mxu0 %v1282
        %1297 = vmatprep.subr.bf16.mxu0 0
        %1298 = vmatpush1.bf16.msra.mxu0 %v1281
        %1299 = vmatprep.subr.bf16.mxu0 0
        %1300 = vmatpush1.bf16.msra.mxu0 %v1280
        %1301 = vmatprep.subr.bf16.mxu0 0
        %1302 = vmatpush1.bf16.msra.mxu0 %v1279
        %1303 = vmatprep.subr.bf16.mxu0 0
        %1304 = vmatpush2.bf16.msra.mxu0 0
        %1305 = vmatprep.subr.bf16.mxu0 0
        %1306 = vmatpush2.bf16.msra.mxu0 0
        %1307 = vmatprep.subr.bf16.mxu0 0
        %1308 = vmatpush2.bf16.msra.mxu0 0
        %1309 = vmatprep.subr.bf16.mxu0 0
        %1310 = vmatpush2.bf16.msra.mxu0 0
        %1311 = vmatprep.subr.bf16.mxu0 0
        %1312 = vmatpush2.bf16.msra.mxu0 0
        %1313 = vmatprep.subr.bf16.mxu0 0
        %1314 = vmatpush2.bf16.msra.mxu0 0
        %1315 = vmatprep.subr.bf16.mxu0 0
        %1316 = vmatpush2.bf16.msra.mxu0 0
        %1317 = vmatprep.subr.bf16.mxu0 0
        %1318 = vmatpush2.bf16.msra.mxu0 0
        %1319 = vmatprep.mubr.bf16.mxu0 0
        %1320 = vmatmul.mubr.bf16.gmra.mxu0 %v1278
        %v1321 = vpop.f32.mrf.mxu0
        %v1322 = vadd.f32 0.0, %v1321
        %v1323 = vpop.f32.mrf.mxu0
        %v1324 = vpop.f32.mrf.mxu0
        %v1325 = vpop.f32.mrf.mxu0
        %1326 = vdwg.mxu0
        %v1327 = vlaneseq
        %v1328 = vand.u32 %v1327, 127
        %vm1329 = vcmp.lt.s32.totalorder %v1328, 8
        %v1330 = vsel %vm1329, %v1322, -1e+30
        %1331 = vmax.xlane.f32.xlu0 %v1330
        %v1332 = vpop.xlane.xlu0 %1331
        %v1333 = vsub.f32 %v1330, %v1332
        %v1334 = vmul.f32 %v1333, 1.442695
        %v1335 = vpow.pop %v1334
        %1336 = vadd.xlane.f32.xlu0 %v1335
        %v1337 = vpop.xlane.xlu0 %1336
        %v1338 = vlog2.pop %v1337
        %v1339 = vmul.f32 %v1338, 0.6931472
        %v1340 = vsub.f32 %v1333, %v1339
        %1341 = vst [vmem:[%s377] sm:$0xff] %v1340
        %s1342 = sand.u32 %s238, 1
        %s1343 = scalar_lea.sflag [#allocation4], %s1342
        %s1344 = sand.u32 %s238, 1
        %s1345 = smul.addr %s1344, 8
        %s1346 = scalar_lea.vmem [#allocation5], %s1345
        // Predicated region
        $region61: #{tpu_custom_call.1} parent=55 // pred_check
          %p1347 = pneg %p248
        $region62: #{tpu_custom_call.1} parent=55 // pred_check_branch
          %1349 = sbr.rel (%p1347) target = $region64
        $region63: #{tpu_custom_call.1} parent=55 // pred_region
          %s1351 = ssub.s32 128, 128
          %1352 = vsyncadd %s1343, %s1351
          %s1353 = smul.addr %s26, 128
          %s1354 = scalar_lea.hbm %s9, %s1353
          %s1356 = sshll.u32 %s1346, 4
          %s1357 = int_to_ptr.vmem [resolvable:$true] %s1356
          %1359 = dma.vmem_to_hbm [thread:$0]  %s1357, 128, %s1354, %s1343
        $region64: #{tpu_custom_call.1} parent=55 // pred_fallthru
          _
      $region56: #{tpu_custom_call.1} parent=5 // pred_fallthru
        _
      %p1360 = scmp.le.s32.totalorder 2, %s21
      // Predicated region
      $region65: #{tpu_custom_call.1} parent=5 // pred_check
        %p1361 = pneg %p1360
      $region66: #{tpu_custom_call.1} parent=5 // pred_check_branch
        %1363 = sbr.rel (%p1361) target = $region68
      $region67: #{tpu_custom_call.1} parent=5 // pred_region
        %s1364 = ssub.s32 %s21, 2
        // Predicated region
        $region69: #{tpu_custom_call.1} parent=67 // pred_check
          %p1365 = pneg %p254
        $region70: #{tpu_custom_call.1} parent=67 // pred_check_branch
          %1367 = sbr.rel (%p1365) target = $region72
        $region71: #{tpu_custom_call.1} parent=67 // pred_region
          %s1368 = sand.u32 %s239, 1
          %s1369 = scalar_lea.sflag [#allocation4], %s1368
          %s1370 = sand.u32 %s239, 1
          %s1371 = smul.addr %s1370, 8
          %s1372 = scalar_lea.vmem [#allocation5], %s1371
          %1373 = dma.done %s1369, 128
        $region72: #{tpu_custom_call.1} parent=67 // pred_fallthru
          _
      $region68: #{tpu_custom_call.1} parent=5 // pred_fallthru
        _
    $region6: #{tpu_custom_call.1} parent=1 // loop_footer
      %s25 = sadd.s32 1, %s21
    $region7: #{tpu_custom_call.1} parent=1 // loop_footer_branch
      %20 = sbr.rel target = $region3
    $region8: #{tpu_custom_call.1} parent=1 // loop_exit
      _
    %1374 = vsyncpa [#allocation3], 1
    %s1375 = scalar_lea.sflag [#allocation3], 1
    %1376 = vsyncpa %s1375, 1
    %1377 = vsyncpa [#allocation4], 1
    %s1378 = scalar_lea.sflag [#allocation4], 1
    %1379 = vsyncpa %s1378, 1

</llo_original>
